<compile_context>
chip_gen: v7x
topology: tpu7x:2x2x1
jax: 0.10.0
libtpu: 0.0.40
codegen_flags: <defaults>
</compile_context>

<pallas_src>
import jax
import jax.numpy as jnp
import numpy as np
from jax.experimental import pallas as pl
from jax.experimental.pallas import tpu as pltpu

# ----- hyperparameters (match module defaults, small synthetic shapes) -------
VOCAB = 100
B = 2            # batch
T = 20           # token sequence length
E = 128          # embedding_dim
K = 5            # conv kernel_size
F = 64           # n_filters
P = 4            # pool_size
H = 70           # cell_size (LSTM hidden)
N_OUT = 2
LC = T - K + 1   # conv "valid" output length = 16
L = LC // P      # pooled length = LSTM sequence length = 4

# lane-aligned padded sizes
VOCAB_PAD = 128
F_PAD = 128
H_PAD = 128


def conv_lstm_kernel(tok_ref, emb_ref, wconv_ref, bconv_ref, wih_ref,
                     whh_ref, bg_ref, wfc_ref, bfc_ref, out_ref):
    # --- fused embedding gather: one-hot (exact 0/1) matmul on the MXU -------
    tok = tok_ref[...]                                              # (B*T, 1) int32
    vocab_ids = jax.lax.broadcasted_iota(jnp.int32, (B * T, VOCAB_PAD), 1)
    onehot = (tok == vocab_ids).astype(jnp.float32)                 # (B*T, VOCAB_PAD)
    x_flat = jnp.dot(onehot, emb_ref[...],
                     preferred_element_type=jnp.float32)            # (B*T, E)

    # --- im2col + single conv matmul + bias + ReLU ----------------------------
    # x_col[b*LC + t, k*E:(k+1)*E] = emb[tokens[b, t+k]]
    cols = []
    for k in range(K):
        parts = [x_flat[b * T + k: b * T + k + LC, :] for b in range(B)]
        cols.append(jnp.concatenate(parts, axis=0))                 # (B*LC, E)
    x_col = jnp.concatenate(cols, axis=1)                           # (B*LC, K*E)
    conv = jnp.dot(x_col, wconv_ref[...],
                   preferred_element_type=jnp.float32)              # (B*LC, F_PAD)
    conv = jnp.maximum(conv + bconv_ref[...], 0.0)

    # --- MaxPool1d, hoisted out of the recurrence (t-major row order) ---------
    pooled = jnp.concatenate(
        [conv[b * LC + t * P: b * LC + (t + 1) * P, :].max(axis=0, keepdims=True)
         for t in range(L) for b in range(B)],
        axis=0)                                                     # (L*B, F_PAD)

    # --- LSTM input projection for ALL timesteps (hoisted, one matmul) --------
    xg_all = jnp.dot(pooled, wih_ref[...],
                     preferred_element_type=jnp.float32) + bg_ref[...]  # (L*B, 4*H_PAD)

    # --- LSTM recurrence: one fused gate matmul per step ----------------------
    h = jnp.zeros((B, H_PAD), jnp.float32)
    c = jnp.zeros((B, H_PAD), jnp.float32)
    for t in range(L):
        gates = xg_all[t * B:(t + 1) * B, :] + jnp.dot(
            h, whh_ref[...], preferred_element_type=jnp.float32)    # (B, 4*H_PAD)
        i_g = jax.nn.sigmoid(gates[:, 0 * H_PAD:1 * H_PAD])
        f_g = jax.nn.sigmoid(gates[:, 1 * H_PAD:2 * H_PAD])
        g_g = jnp.tanh(gates[:, 2 * H_PAD:3 * H_PAD])
        o_g = jax.nn.sigmoid(gates[:, 3 * H_PAD:4 * H_PAD])
        c = f_g * c + i_g * g_g
        h = o_g * jnp.tanh(c)
        # padded H lanes stay exactly 0: zero-padded weights/biases give
        # preactivation 0 -> c_pad' = 0.5*c_pad + 0.5*tanh(0) = 0, h_pad = 0.

    # --- final linear layer on the last hidden state ---------------------------
    logits = jnp.dot(h, wfc_ref[...],
                     preferred_element_type=jnp.float32) + bfc_ref[...]
    out_ref[...] = logits.astype(out_ref.dtype)


@jax.jit
def conv_lstm_forward(tokens, padded_params):
    tok = tokens.reshape(B * T, 1).astype(jnp.int32)
    vmem = pltpu.MemorySpace.VMEM
    return pl.pallas_call(
        conv_lstm_kernel,
        out_shape=jax.ShapeDtypeStruct((B, N_OUT), jnp.float32),
        in_specs=[pl.BlockSpec(memory_space=vmem)] * 9,
        out_specs=pl.BlockSpec(memory_space=vmem),
    )(tok, *padded_params)


def reference_forward(tokens, params):
    """Pure-JAX reference mirroring the PyTorch forward semantics (unpadded)."""
    emb, wconv, bconv, wih, whh, bg, wfc, bfc = params
    x = jnp.take(emb, tokens, axis=0).astype(jnp.float32)  # (B, T, E)
    conv = jnp.zeros((B, LC, F), jnp.float32)
    for k in range(K):
        conv = conv + jnp.einsum('ble,ef->blf', x[:, k:k + LC, :], wconv[k])
    conv = jnp.maximum(conv + bconv, 0.0)            # (B, LC, F)
    pooled = conv.reshape(B, L, P, F).max(axis=2)    # (B, L, F)
    h = jnp.zeros((B, H), jnp.float32)
    c = jnp.zeros((B, H), jnp.float32)
    for t in range(L):
        x_t = pooled[:, t, :]
        gs = [x_t @ wih[g] + h @ whh[g] + bg[g] for g in range(4)]
        i_g = jax.nn.sigmoid(gs[0])
        f_g = jax.nn.sigmoid(gs[1])
        g_g = jnp.tanh(gs[2])
        o_g = jax.nn.sigmoid(gs[3])
        c = f_g * c + i_g * g_g
        h = o_g * jnp.tanh(c)
    return h @ wfc + bfc


def init_params(key):
    """Unpadded, PyTorch-equivalent parameters."""
    ks = jax.random.split(key, 9)
    emb = jax.random.normal(ks[0], (VOCAB, E), jnp.float32) * 0.1
    wconv = jax.random.normal(ks[1], (K, E, F), jnp.float32) * 0.05
    bconv = jax.random.normal(ks[2], (1, F), jnp.float32) * 0.05
    wih = jax.random.normal(ks[3], (4, F, H), jnp.float32) * 0.1
    whh = jax.random.normal(ks[4], (4, H, H), jnp.float32) * 0.1
    b_ih = jax.random.normal(ks[5], (4, 1, H), jnp.float32) * 0.1
    b_hh = jax.random.normal(ks[6], (4, 1, H), jnp.float32) * 0.1
    bg = b_ih + b_hh                      # PyTorch adds both LSTM biases
    wfc = jax.random.normal(ks[7], (H, N_OUT), jnp.float32) * 0.1
    bfc = jax.random.normal(ks[8], (1, N_OUT), jnp.float32) * 0.1
    return (emb, wconv, bconv, wih, whh, bg, wfc, bfc)


def prepare_padded_params(params):
    """One-time host-side repack into the lane-aligned kernel layout."""
    emb, wconv, bconv, wih, whh, bg, wfc, bfc = params
    emb_p = jnp.zeros((VOCAB_PAD, E), jnp.float32).at[:VOCAB, :].set(emb)
    wconv_col = jnp.zeros((K * E, F_PAD), jnp.float32).at[:, :F].set(
        wconv.reshape(K * E, F))
    bconv_p = jnp.zeros((1, F_PAD), jnp.float32).at[:, :F].set(bconv)
    wih_cat = jnp.zeros((F_PAD, 4 * H_PAD), jnp.float32)
    whh_cat = jnp.zeros((H_PAD, 4 * H_PAD), jnp.float32)
    bg_cat = jnp.zeros((1, 4 * H_PAD), jnp.float32)
    for g in range(4):                      # PyTorch gate order i, f, g, o
        wih_cat = wih_cat.at[:F, g * H_PAD:g * H_PAD + H].set(wih[g])
        whh_cat = whh_cat.at[:H, g * H_PAD:g * H_PAD + H].set(whh[g])
        bg_cat = bg_cat.at[:, g * H_PAD:g * H_PAD + H].set(bg[g])
    wfc_p = jnp.zeros((H_PAD, N_OUT), jnp.float32).at[:H, :].set(wfc)
    return (emb_p, wconv_col, bconv_p, wih_cat, whh_cat, bg_cat, wfc_p, bfc)


if __name__ == "__main__":
    key = jax.random.PRNGKey(0)
    pkey, xkey = jax.random.split(key)
    params = init_params(pkey)
    padded_params = prepare_padded_params(params)
    tokens = jax.random.randint(xkey, (B, T), 0, VOCAB, dtype=jnp.int32)

    logits = conv_lstm_forward(tokens, padded_params)
    jax.block_until_ready(logits)

    ref = reference_forward(tokens, params)
    np.testing.assert_allclose(np.asarray(logits), np.asarray(ref),
                               rtol=1e-4, atol=2e-4)
    print("KERNEL_OK")
</pallas_src>

<mosaic_0001>
module attributes {stable_mosaic.version = 11 : i64} {
  func.func @conv_lstm_kernel(%arg0: memref<40x1xi32, #tpu.memory_space<vmem>>, %arg1: memref<128x128xf32, #tpu.memory_space<vmem>>, %arg2: memref<640x128xf32, #tpu.memory_space<vmem>>, %arg3: memref<1x128xf32, #tpu.memory_space<vmem>>, %arg4: memref<128x512xf32, #tpu.memory_space<vmem>>, %arg5: memref<128x512xf32, #tpu.memory_space<vmem>>, %arg6: memref<1x512xf32, #tpu.memory_space<vmem>>, %arg7: memref<128x2xf32, #tpu.memory_space<vmem>>, %arg8: memref<1x2xf32, #tpu.memory_space<vmem>>, %arg9: memref<2x2xf32, #tpu.memory_space<vmem>>) attributes {dimension_semantics = [], scalar_prefetch = 0 : i64, scratch_operands = 0 : i64, tpu.core_type = #tpu.core_type<tc>} {
    %c0 = arith.constant 0 : index
    %c0_0 = arith.constant 0 : index
    %0 = vector.load %arg0[%c0, %c0_0] : memref<40x1xi32, #tpu.memory_space<vmem>>, vector<40x1xi32>
    %1 = tpu.iota {dimensions = array<i32: 1>} : vector<40x128xi32>
    %2 = vector.broadcast %0 : vector<40x1xi32> to vector<40x128xi32>
    %3 = arith.cmpi eq, %2, %1 : vector<40x128xi32>
    %4 = arith.extui %3 : vector<40x128xi1> to vector<40x128xi32>
    %5 = arith.sitofp %4 : vector<40x128xi32> to vector<40x128xf32>
    %c0_1 = arith.constant 0 : index
    %c0_2 = arith.constant 0 : index
    %6 = vector.load %arg1[%c0_1, %c0_2] : memref<128x128xf32, #tpu.memory_space<vmem>>, vector<128x128xf32>
    %cst = arith.constant dense<0.000000e+00> : vector<40x128xf32>
    %7 = tpu.matmul %5, %6, %cst {dimension_numbers = #tpu.dot_dimension_numbers<[1], [0], [0], [1], [0, 0, 1, 1], [], []>} : vector<40x128xf32>, vector<128x128xf32>, vector<40x128xf32> -> vector<40x128xf32>
    %8 = vector.extract_strided_slice %7 {offsets = [0, 0], sizes = [16, 128], strides = [1, 1]} : vector<40x128xf32> to vector<16x128xf32>
    %9 = vector.extract_strided_slice %7 {offsets = [20, 0], sizes = [16, 128], strides = [1, 1]} : vector<40x128xf32> to vector<16x128xf32>
    %10 = tpu.concatenate %8, %9 in 0 : vector<16x128xf32>, vector<16x128xf32> -> vector<32x128xf32>
    %11 = vector.extract_strided_slice %7 {offsets = [1, 0], sizes = [16, 128], strides = [1, 1]} : vector<40x128xf32> to vector<16x128xf32>
    %12 = vector.extract_strided_slice %7 {offsets = [21, 0], sizes = [16, 128], strides = [1, 1]} : vector<40x128xf32> to vector<16x128xf32>
    %13 = tpu.concatenate %11, %12 in 0 : vector<16x128xf32>, vector<16x128xf32> -> vector<32x128xf32>
    %14 = vector.extract_strided_slice %7 {offsets = [2, 0], sizes = [16, 128], strides = [1, 1]} : vector<40x128xf32> to vector<16x128xf32>
    %15 = vector.extract_strided_slice %7 {offsets = [22, 0], sizes = [16, 128], strides = [1, 1]} : vector<40x128xf32> to vector<16x128xf32>
    %16 = tpu.concatenate %14, %15 in 0 : vector<16x128xf32>, vector<16x128xf32> -> vector<32x128xf32>
    %17 = vector.extract_strided_slice %7 {offsets = [3, 0], sizes = [16, 128], strides = [1, 1]} : vector<40x128xf32> to vector<16x128xf32>
    %18 = vector.extract_strided_slice %7 {offsets = [23, 0], sizes = [16, 128], strides = [1, 1]} : vector<40x128xf32> to vector<16x128xf32>
    %19 = tpu.concatenate %17, %18 in 0 : vector<16x128xf32>, vector<16x128xf32> -> vector<32x128xf32>
    %20 = vector.extract_strided_slice %7 {offsets = [4, 0], sizes = [16, 128], strides = [1, 1]} : vector<40x128xf32> to vector<16x128xf32>
    %21 = vector.extract_strided_slice %7 {offsets = [24, 0], sizes = [16, 128], strides = [1, 1]} : vector<40x128xf32> to vector<16x128xf32>
    %22 = tpu.concatenate %20, %21 in 0 : vector<16x128xf32>, vector<16x128xf32> -> vector<32x128xf32>
    %23 = tpu.concatenate %10, %13, %16, %19, %22 in 1 : vector<32x128xf32>, vector<32x128xf32>, vector<32x128xf32>, vector<32x128xf32>, vector<32x128xf32> -> vector<32x640xf32>
    %c0_3 = arith.constant 0 : index
    %c0_4 = arith.constant 0 : index
    %24 = vector.load %arg2[%c0_3, %c0_4] : memref<640x128xf32, #tpu.memory_space<vmem>>, vector<640x128xf32>
    %cst_5 = arith.constant dense<0.000000e+00> : vector<32x128xf32>
    %25 = tpu.matmul %23, %24, %cst_5 {dimension_numbers = #tpu.dot_dimension_numbers<[1], [0], [0], [1], [0, 0, 1, 1], [], []>} : vector<32x640xf32>, vector<640x128xf32>, vector<32x128xf32> -> vector<32x128xf32>
    %c0_6 = arith.constant 0 : index
    %c0_7 = arith.constant 0 : index
    %26 = vector.load %arg3[%c0_6, %c0_7] : memref<1x128xf32, #tpu.memory_space<vmem>>, vector<1x128xf32>
    %27 = vector.broadcast %26 : vector<1x128xf32> to vector<32x128xf32>
    %28 = arith.addf %25, %27 : vector<32x128xf32>
    %cst_8 = arith.constant 0.000000e+00 : f32
    %29 = vector.broadcast %cst_8 : f32 to vector<32x128xf32>
    %30 = arith.maximumf %28, %29 : vector<32x128xf32>
    %31 = vector.extract_strided_slice %30 {offsets = [0, 0], sizes = [4, 128], strides = [1, 1]} : vector<32x128xf32> to vector<4x128xf32>
    %cst_9 = arith.constant dense<0xFF800000> : vector<128xf32>
    %32 = vector.multi_reduction <maximumf>, %31, %cst_9 [0] : vector<4x128xf32> to vector<128xf32>
    %33 = vector.shape_cast %32 : vector<128xf32> to vector<1x128xf32>
    %34 = vector.extract_strided_slice %30 {offsets = [16, 0], sizes = [4, 128], strides = [1, 1]} : vector<32x128xf32> to vector<4x128xf32>
    %cst_10 = arith.constant dense<0xFF800000> : vector<128xf32>
    %35 = vector.multi_reduction <maximumf>, %34, %cst_10 [0] : vector<4x128xf32> to vector<128xf32>
    %36 = vector.shape_cast %35 : vector<128xf32> to vector<1x128xf32>
    %37 = vector.extract_strided_slice %30 {offsets = [4, 0], sizes = [4, 128], strides = [1, 1]} : vector<32x128xf32> to vector<4x128xf32>
    %cst_11 = arith.constant dense<0xFF800000> : vector<128xf32>
    %38 = vector.multi_reduction <maximumf>, %37, %cst_11 [0] : vector<4x128xf32> to vector<128xf32>
    %39 = vector.shape_cast %38 : vector<128xf32> to vector<1x128xf32>
    %40 = vector.extract_strided_slice %30 {offsets = [20, 0], sizes = [4, 128], strides = [1, 1]} : vector<32x128xf32> to vector<4x128xf32>
    %cst_12 = arith.constant dense<0xFF800000> : vector<128xf32>
    %41 = vector.multi_reduction <maximumf>, %40, %cst_12 [0] : vector<4x128xf32> to vector<128xf32>
    %42 = vector.shape_cast %41 : vector<128xf32> to vector<1x128xf32>
    %43 = vector.extract_strided_slice %30 {offsets = [8, 0], sizes = [4, 128], strides = [1, 1]} : vector<32x128xf32> to vector<4x128xf32>
    %cst_13 = arith.constant dense<0xFF800000> : vector<128xf32>
    %44 = vector.multi_reduction <maximumf>, %43, %cst_13 [0] : vector<4x128xf32> to vector<128xf32>
    %45 = vector.shape_cast %44 : vector<128xf32> to vector<1x128xf32>
    %46 = vector.extract_strided_slice %30 {offsets = [24, 0], sizes = [4, 128], strides = [1, 1]} : vector<32x128xf32> to vector<4x128xf32>
    %cst_14 = arith.constant dense<0xFF800000> : vector<128xf32>
    %47 = vector.multi_reduction <maximumf>, %46, %cst_14 [0] : vector<4x128xf32> to vector<128xf32>
    %48 = vector.shape_cast %47 : vector<128xf32> to vector<1x128xf32>
    %49 = vector.extract_strided_slice %30 {offsets = [12, 0], sizes = [4, 128], strides = [1, 1]} : vector<32x128xf32> to vector<4x128xf32>
    %cst_15 = arith.constant dense<0xFF800000> : vector<128xf32>
    %50 = vector.multi_reduction <maximumf>, %49, %cst_15 [0] : vector<4x128xf32> to vector<128xf32>
    %51 = vector.shape_cast %50 : vector<128xf32> to vector<1x128xf32>
    %52 = vector.extract_strided_slice %30 {offsets = [28, 0], sizes = [4, 128], strides = [1, 1]} : vector<32x128xf32> to vector<4x128xf32>
    %cst_16 = arith.constant dense<0xFF800000> : vector<128xf32>
    %53 = vector.multi_reduction <maximumf>, %52, %cst_16 [0] : vector<4x128xf32> to vector<128xf32>
    %54 = vector.shape_cast %53 : vector<128xf32> to vector<1x128xf32>
    %55 = tpu.concatenate %33, %36, %39, %42, %45, %48, %51, %54 in 0 : vector<1x128xf32>, vector<1x128xf32>, vector<1x128xf32>, vector<1x128xf32>, vector<1x128xf32>, vector<1x128xf32>, vector<1x128xf32>, vector<1x128xf32> -> vector<8x128xf32>
    %c0_17 = arith.constant 0 : index
    %c0_18 = arith.constant 0 : index
    %56 = vector.load %arg4[%c0_17, %c0_18] : memref<128x512xf32, #tpu.memory_space<vmem>>, vector<128x512xf32>
    %cst_19 = arith.constant dense<0.000000e+00> : vector<8x512xf32>
    %57 = tpu.matmul %55, %56, %cst_19 {dimension_numbers = #tpu.dot_dimension_numbers<[1], [0], [0], [1], [0, 0, 1, 1], [], []>} : vector<8x128xf32>, vector<128x512xf32>, vector<8x512xf32> -> vector<8x512xf32>
    %c0_20 = arith.constant 0 : index
    %c0_21 = arith.constant 0 : index
    %58 = vector.load %arg6[%c0_20, %c0_21] : memref<1x512xf32, #tpu.memory_space<vmem>>, vector<1x512xf32>
    %59 = vector.broadcast %58 : vector<1x512xf32> to vector<8x512xf32>
    %60 = arith.addf %57, %59 : vector<8x512xf32>
    %cst_22 = arith.constant 0.000000e+00 : f32
    %61 = vector.broadcast %cst_22 : f32 to vector<2x128xf32>
    %cst_23 = arith.constant 0.000000e+00 : f32
    %62 = vector.broadcast %cst_23 : f32 to vector<2x128xf32>
    %63 = vector.extract_strided_slice %60 {offsets = [0, 0], sizes = [2, 512], strides = [1, 1]} : vector<8x512xf32> to vector<2x512xf32>
    %c0_24 = arith.constant 0 : index
    %c0_25 = arith.constant 0 : index
    %64 = vector.load %arg5[%c0_24, %c0_25] : memref<128x512xf32, #tpu.memory_space<vmem>>, vector<128x512xf32>
    %cst_26 = arith.constant dense<0.000000e+00> : vector<2x512xf32>
    %65 = tpu.matmul %61, %64, %cst_26 {dimension_numbers = #tpu.dot_dimension_numbers<[1], [0], [0], [1], [0, 0, 1, 1], [], []>} : vector<2x128xf32>, vector<128x512xf32>, vector<2x512xf32> -> vector<2x512xf32>
    %66 = arith.addf %63, %65 : vector<2x512xf32>
    %67 = vector.extract_strided_slice %66 {offsets = [0, 0], sizes = [2, 128], strides = [1, 1]} : vector<2x512xf32> to vector<2x128xf32>
    %68 = arith.negf %67 : vector<2x128xf32>
    %69 = math.exp %68 : vector<2x128xf32>
    %cst_27 = arith.constant 1.000000e+00 : f32
    %70 = vector.broadcast %cst_27 : f32 to vector<2x128xf32>
    %71 = arith.addf %70, %69 : vector<2x128xf32>
    %72 = arith.divf %70, %71 : vector<2x128xf32>
    %73 = vector.extract_strided_slice %66 {offsets = [0, 128], sizes = [2, 128], strides = [1, 1]} : vector<2x512xf32> to vector<2x128xf32>
    %74 = arith.negf %73 : vector<2x128xf32>
    %75 = math.exp %74 : vector<2x128xf32>
    %cst_28 = arith.constant 1.000000e+00 : f32
    %76 = vector.broadcast %cst_28 : f32 to vector<2x128xf32>
    %77 = arith.addf %76, %75 : vector<2x128xf32>
    %78 = arith.divf %76, %77 : vector<2x128xf32>
    %79 = vector.extract_strided_slice %66 {offsets = [0, 256], sizes = [2, 128], strides = [1, 1]} : vector<2x512xf32> to vector<2x128xf32>
    %80 = math.tanh %79 : vector<2x128xf32>
    %81 = vector.extract_strided_slice %66 {offsets = [0, 384], sizes = [2, 128], strides = [1, 1]} : vector<2x512xf32> to vector<2x128xf32>
    %82 = arith.negf %81 : vector<2x128xf32>
    %83 = math.exp %82 : vector<2x128xf32>
    %cst_29 = arith.constant 1.000000e+00 : f32
    %84 = vector.broadcast %cst_29 : f32 to vector<2x128xf32>
    %85 = arith.addf %84, %83 : vector<2x128xf32>
    %86 = arith.divf %84, %85 : vector<2x128xf32>
    %87 = arith.mulf %78, %62 : vector<2x128xf32>
    %88 = arith.mulf %72, %80 : vector<2x128xf32>
    %89 = arith.addf %87, %88 : vector<2x128xf32>
    %90 = math.tanh %89 : vector<2x128xf32>
    %91 = arith.mulf %86, %90 : vector<2x128xf32>
    %92 = vector.extract_strided_slice %60 {offsets = [2, 0], sizes = [2, 512], strides = [1, 1]} : vector<8x512xf32> to vector<2x512xf32>
    %c0_30 = arith.constant 0 : index
    %c0_31 = arith.constant 0 : index
    %93 = vector.load %arg5[%c0_30, %c0_31] : memref<128x512xf32, #tpu.memory_space<vmem>>, vector<128x512xf32>
    %cst_32 = arith.constant dense<0.000000e+00> : vector<2x512xf32>
    %94 = tpu.matmul %91, %93, %cst_32 {dimension_numbers = #tpu.dot_dimension_numbers<[1], [0], [0], [1], [0, 0, 1, 1], [], []>} : vector<2x128xf32>, vector<128x512xf32>, vector<2x512xf32> -> vector<2x512xf32>
    %95 = arith.addf %92, %94 : vector<2x512xf32>
    %96 = vector.extract_strided_slice %95 {offsets = [0, 0], sizes = [2, 128], strides = [1, 1]} : vector<2x512xf32> to vector<2x128xf32>
    %97 = arith.negf %96 : vector<2x128xf32>
    %98 = math.exp %97 : vector<2x128xf32>
    %cst_33 = arith.constant 1.000000e+00 : f32
    %99 = vector.broadcast %cst_33 : f32 to vector<2x128xf32>
    %100 = arith.addf %99, %98 : vector<2x128xf32>
    %101 = arith.divf %99, %100 : vector<2x128xf32>
    %102 = vector.extract_strided_slice %95 {offsets = [0, 128], sizes = [2, 128], strides = [1, 1]} : vector<2x512xf32> to vector<2x128xf32>
    %103 = arith.negf %102 : vector<2x128xf32>
    %104 = math.exp %103 : vector<2x128xf32>
    %cst_34 = arith.constant 1.000000e+00 : f32
    %105 = vector.broadcast %cst_34 : f32 to vector<2x128xf32>
    %106 = arith.addf %105, %104 : vector<2x128xf32>
    %107 = arith.divf %105, %106 : vector<2x128xf32>
    %108 = vector.extract_strided_slice %95 {offsets = [0, 256], sizes = [2, 128], strides = [1, 1]} : vector<2x512xf32> to vector<2x128xf32>
    %109 = math.tanh %108 : vector<2x128xf32>
    %110 = vector.extract_strided_slice %95 {offsets = [0, 384], sizes = [2, 128], strides = [1, 1]} : vector<2x512xf32> to vector<2x128xf32>
    %111 = arith.negf %110 : vector<2x128xf32>
    %112 = math.exp %111 : vector<2x128xf32>
    %cst_35 = arith.constant 1.000000e+00 : f32
    %113 = vector.broadcast %cst_35 : f32 to vector<2x128xf32>
    %114 = arith.addf %113, %112 : vector<2x128xf32>
    %115 = arith.divf %113, %114 : vector<2x128xf32>
    %116 = arith.mulf %107, %89 : vector<2x128xf32>
    %117 = arith.mulf %101, %109 : vector<2x128xf32>
    %118 = arith.addf %116, %117 : vector<2x128xf32>
    %119 = math.tanh %118 : vector<2x128xf32>
    %120 = arith.mulf %115, %119 : vector<2x128xf32>
    %121 = vector.extract_strided_slice %60 {offsets = [4, 0], sizes = [2, 512], strides = [1, 1]} : vector<8x512xf32> to vector<2x512xf32>
    %c0_36 = arith.constant 0 : index
    %c0_37 = arith.constant 0 : index
    %122 = vector.load %arg5[%c0_36, %c0_37] : memref<128x512xf32, #tpu.memory_space<vmem>>, vector<128x512xf32>
    %cst_38 = arith.constant dense<0.000000e+00> : vector<2x512xf32>
    %123 = tpu.matmul %120, %122, %cst_38 {dimension_numbers = #tpu.dot_dimension_numbers<[1], [0], [0], [1], [0, 0, 1, 1], [], []>} : vector<2x128xf32>, vector<128x512xf32>, vector<2x512xf32> -> vector<2x512xf32>
    %124 = arith.addf %121, %123 : vector<2x512xf32>
    %125 = vector.extract_strided_slice %124 {offsets = [0, 0], sizes = [2, 128], strides = [1, 1]} : vector<2x512xf32> to vector<2x128xf32>
    %126 = arith.negf %125 : vector<2x128xf32>
    %127 = math.exp %126 : vector<2x128xf32>
    %cst_39 = arith.constant 1.000000e+00 : f32
    %128 = vector.broadcast %cst_39 : f32 to vector<2x128xf32>
    %129 = arith.addf %128, %127 : vector<2x128xf32>
    %130 = arith.divf %128, %129 : vector<2x128xf32>
    %131 = vector.extract_strided_slice %124 {offsets = [0, 128], sizes = [2, 128], strides = [1, 1]} : vector<2x512xf32> to vector<2x128xf32>
    %132 = arith.negf %131 : vector<2x128xf32>
    %133 = math.exp %132 : vector<2x128xf32>
    %cst_40 = arith.constant 1.000000e+00 : f32
    %134 = vector.broadcast %cst_40 : f32 to vector<2x128xf32>
    %135 = arith.addf %134, %133 : vector<2x128xf32>
    %136 = arith.divf %134, %135 : vector<2x128xf32>
    %137 = vector.extract_strided_slice %124 {offsets = [0, 256], sizes = [2, 128], strides = [1, 1]} : vector<2x512xf32> to vector<2x128xf32>
    %138 = math.tanh %137 : vector<2x128xf32>
    %139 = vector.extract_strided_slice %124 {offsets = [0, 384], sizes = [2, 128], strides = [1, 1]} : vector<2x512xf32> to vector<2x128xf32>
    %140 = arith.negf %139 : vector<2x128xf32>
    %141 = math.exp %140 : vector<2x128xf32>
    %cst_41 = arith.constant 1.000000e+00 : f32
    %142 = vector.broadcast %cst_41 : f32 to vector<2x128xf32>
    %143 = arith.addf %142, %141 : vector<2x128xf32>
    %144 = arith.divf %142, %143 : vector<2x128xf32>
    %145 = arith.mulf %136, %118 : vector<2x128xf32>
    %146 = arith.mulf %130, %138 : vector<2x128xf32>
    %147 = arith.addf %145, %146 : vector<2x128xf32>
    %148 = math.tanh %147 : vector<2x128xf32>
    %149 = arith.mulf %144, %148 : vector<2x128xf32>
    %150 = vector.extract_strided_slice %60 {offsets = [6, 0], sizes = [2, 512], strides = [1, 1]} : vector<8x512xf32> to vector<2x512xf32>
    %c0_42 = arith.constant 0 : index
    %c0_43 = arith.constant 0 : index
    %151 = vector.load %arg5[%c0_42, %c0_43] : memref<128x512xf32, #tpu.memory_space<vmem>>, vector<128x512xf32>
    %cst_44 = arith.constant dense<0.000000e+00> : vector<2x512xf32>
    %152 = tpu.matmul %149, %151, %cst_44 {dimension_numbers = #tpu.dot_dimension_numbers<[1], [0], [0], [1], [0, 0, 1, 1], [], []>} : vector<2x128xf32>, vector<128x512xf32>, vector<2x512xf32> -> vector<2x512xf32>
    %153 = arith.addf %150, %152 : vector<2x512xf32>
    %154 = vector.extract_strided_slice %153 {offsets = [0, 0], sizes = [2, 128], strides = [1, 1]} : vector<2x512xf32> to vector<2x128xf32>
    %155 = arith.negf %154 : vector<2x128xf32>
    %156 = math.exp %155 : vector<2x128xf32>
    %cst_45 = arith.constant 1.000000e+00 : f32
    %157 = vector.broadcast %cst_45 : f32 to vector<2x128xf32>
    %158 = arith.addf %157, %156 : vector<2x128xf32>
    %159 = arith.divf %157, %158 : vector<2x128xf32>
    %160 = vector.extract_strided_slice %153 {offsets = [0, 128], sizes = [2, 128], strides = [1, 1]} : vector<2x512xf32> to vector<2x128xf32>
    %161 = arith.negf %160 : vector<2x128xf32>
    %162 = math.exp %161 : vector<2x128xf32>
    %cst_46 = arith.constant 1.000000e+00 : f32
    %163 = vector.broadcast %cst_46 : f32 to vector<2x128xf32>
    %164 = arith.addf %163, %162 : vector<2x128xf32>
    %165 = arith.divf %163, %164 : vector<2x128xf32>
    %166 = vector.extract_strided_slice %153 {offsets = [0, 256], sizes = [2, 128], strides = [1, 1]} : vector<2x512xf32> to vector<2x128xf32>
    %167 = math.tanh %166 : vector<2x128xf32>
    %168 = vector.extract_strided_slice %153 {offsets = [0, 384], sizes = [2, 128], strides = [1, 1]} : vector<2x512xf32> to vector<2x128xf32>
    %169 = arith.negf %168 : vector<2x128xf32>
    %170 = math.exp %169 : vector<2x128xf32>
    %cst_47 = arith.constant 1.000000e+00 : f32
    %171 = vector.broadcast %cst_47 : f32 to vector<2x128xf32>
    %172 = arith.addf %171, %170 : vector<2x128xf32>
    %173 = arith.divf %171, %172 : vector<2x128xf32>
    %174 = arith.mulf %165, %147 : vector<2x128xf32>
    %175 = arith.mulf %159, %167 : vector<2x128xf32>
    %176 = arith.addf %174, %175 : vector<2x128xf32>
    %177 = math.tanh %176 : vector<2x128xf32>
    %178 = arith.mulf %173, %177 : vector<2x128xf32>
    %c0_48 = arith.constant 0 : index
    %c0_49 = arith.constant 0 : index
    %179 = vector.load %arg7[%c0_48, %c0_49] : memref<128x2xf32, #tpu.memory_space<vmem>>, vector<128x2xf32>
    %cst_50 = arith.constant dense<0.000000e+00> : vector<2x2xf32>
    %180 = tpu.matmul %178, %179, %cst_50 {dimension_numbers = #tpu.dot_dimension_numbers<[1], [0], [0], [1], [0, 0, 1, 1], [], []>} : vector<2x128xf32>, vector<128x2xf32>, vector<2x2xf32> -> vector<2x2xf32>
    %c0_51 = arith.constant 0 : index
    %c0_52 = arith.constant 0 : index
    %181 = vector.load %arg8[%c0_51, %c0_52] : memref<1x2xf32, #tpu.memory_space<vmem>>, vector<1x2xf32>
    %182 = vector.broadcast %181 : vector<1x2xf32> to vector<2x2xf32>
    %183 = arith.addf %180, %182 : vector<2x2xf32>
    %c0_53 = arith.constant 0 : index
    %c0_54 = arith.constant 0 : index
    %184 = vector.load %arg9[%c0_53, %c0_54] : memref<2x2xf32, #tpu.memory_space<vmem>>, vector<2x2xf32>
    tpu.vector_store %arg9[%c0_53, %c0_54], %183 {strides = array<i32>} : memref<2x2xf32, #tpu.memory_space<vmem>>, vector<2x2xf32>,
    return
  }
}

</mosaic_0001>

<llo_original>
// kernel: conv_lstm_forward.1
$region0: #{conv_lstm_forward.1}
  #allocation0 [shape = 'u32[]', space=smem, size = 0x4, offset = 0x4, fixed_abs, tag = 'smem constant byte address 0x4 - core index']
  #allocation1 [shape = 'u32[144,128]{1,0:T(1,128)}', space=vmem, size = 0x12000, scoped, tag = 'internal scratch']
  %s0 = inlined_call_operand.vmem [shape: s32[40,1], index: 0, kind: input, shape index: {}]
  %s1 = inlined_call_operand.vmem [shape: f32[128,128], index: 1, kind: input, shape index: {}]
  %s2 = inlined_call_operand.hbm [shape: f32[640,128], index: 2, kind: input, shape index: {}]
  %s3 = inlined_call_operand.vmem [shape: f32[1,128], index: 3, kind: input, shape index: {}]
  %s4 = inlined_call_operand.hbm [shape: f32[128,512], index: 4, kind: input, shape index: {}]
  %s5 = inlined_call_operand.hbm [shape: f32[128,512], index: 5, kind: input, shape index: {}]
  %s6 = inlined_call_operand.vmem [shape: f32[1,512], index: 6, kind: input, shape index: {}]
  %s7 = inlined_call_operand.vmem [shape: f32[128,2], index: 7, kind: input, shape index: {}]
  %s8 = inlined_call_operand.vmem [shape: f32[1,2], index: 8, kind: input, shape index: {}]
  %s9 = inlined_call_operand.hbm [shape: f32[2,2], index: 9, kind: output, shape index: {}]
  %s10 = sld [smem:[#allocation0]]
  $region58: #{conv_lstm_forward.1} parent=0
    _
  %s12 = ssub.s32 1, %s10
  %s13 = scalar_select 0, %s12, %s10
  $region1: #{conv_lstm_forward.1} parent=0
    #allocation2 [shape = 'u8[327680]{0}', space=vmem, size = 0x50000, scoped, tag = 'input window, operand 2, single buffered']
    #allocation3 [shape = 's32[1]{0}', space=sflag, size = 0x4, scoped, tag = 'scoped memory for conv_lstm_forward.1']
    #allocation4 [shape = 's32[1]{0}', space=sflag, size = 0x4, scoped, tag = 'scoped memory for conv_lstm_forward.1']
    #allocation5 [shape = 'u8[262144]{0}', space=vmem, size = 0x40000, scoped, tag = 'input window, operand 4, single buffered']
    #allocation6 [shape = 's32[1]{0}', space=sflag, size = 0x4, scoped, tag = 'scoped memory for conv_lstm_forward.1']
    #allocation7 [shape = 'u8[262144]{0}', space=vmem, size = 0x40000, scoped, tag = 'input window, operand 5, single buffered']
    #allocation8 [shape = 'u8[1024]{0}', space=vmem, size = 0x400, scoped, tag = 'output window, operand 0, single buffered']
    %14 = vsyncpa [#allocation3], 0
    %15 = vsyncpa [#allocation6], 0
    %16 = vsyncpa [#allocation4], 0
    // Predicated region
    $region2: #{conv_lstm_forward.1} parent=1 // pred_check
      _
    $region3: #{conv_lstm_forward.1} parent=1 // pred_check_branch
      %18 = sbr.rel (0) target = $region5
    $region4: #{conv_lstm_forward.1} parent=1 // pred_region
      _
    $region5: #{conv_lstm_forward.1} parent=1 // pred_fallthru
      _
    // Predicated region
    $region6: #{conv_lstm_forward.1} parent=1 // pred_check
      _
    $region7: #{conv_lstm_forward.1} parent=1 // pred_check_branch
      %20 = sbr.rel (0) target = $region9
    $region8: #{conv_lstm_forward.1} parent=1 // pred_region
      _
    $region9: #{conv_lstm_forward.1} parent=1 // pred_fallthru
      _
    // Predicated region
    $region10: #{conv_lstm_forward.1} parent=1 // pred_check
      _
    $region11: #{conv_lstm_forward.1} parent=1 // pred_check_branch
      %22 = sbr.rel (0) target = $region13
    $region12: #{conv_lstm_forward.1} parent=1 // pred_region
      %s24 = ssub.s32 10240, 10240
      %25 = vsyncadd [#allocation3], %s24
      %s26 = sshll.u32 [#allocation2], 4
      %s27 = int_to_ptr.vmem [resolvable:$true] %s26
      %32 = dma.hbm_to_vmem [thread:$0]  %s2, 10240, %s27, [#allocation3], 128, 128, 8
    $region13: #{conv_lstm_forward.1} parent=1 // pred_fallthru
      _
    // Predicated region
    $region14: #{conv_lstm_forward.1} parent=1 // pred_check
      _
    $region15: #{conv_lstm_forward.1} parent=1 // pred_check_branch
      %34 = sbr.rel (0) target = $region17
    $region16: #{conv_lstm_forward.1} parent=1 // pred_region
      _
    $region17: #{conv_lstm_forward.1} parent=1 // pred_fallthru
      _
    // Predicated region
    $region18: #{conv_lstm_forward.1} parent=1 // pred_check
      _
    $region19: #{conv_lstm_forward.1} parent=1 // pred_check_branch
      %36 = sbr.rel (0) target = $region21
    $region20: #{conv_lstm_forward.1} parent=1 // pred_region
      %s38 = ssub.s32 8192, 8192
      %39 = vsyncadd [#allocation6], %s38
      %s40 = sshll.u32 [#allocation5], 4
      %s41 = int_to_ptr.vmem [resolvable:$true] %s40
      %46 = dma.hbm_to_vmem [thread:$0]  %s4, 8192, %s41, [#allocation6], 512, 512, 32
    $region21: #{conv_lstm_forward.1} parent=1 // pred_fallthru
      _
    // Predicated region
    $region22: #{conv_lstm_forward.1} parent=1 // pred_check
      _
    $region23: #{conv_lstm_forward.1} parent=1 // pred_check_branch
      %48 = sbr.rel (0) target = $region25
    $region24: #{conv_lstm_forward.1} parent=1 // pred_region
      %s50 = ssub.s32 8192, 8192
      %51 = vsyncadd [#allocation6], %s50
      %s52 = sshll.u32 [#allocation7], 4
      %s53 = int_to_ptr.vmem [resolvable:$true] %s52
      %58 = dma.hbm_to_vmem [thread:$0]  %s5, 8192, %s53, [#allocation6], 512, 512, 32
    $region25: #{conv_lstm_forward.1} parent=1 // pred_fallthru
      _
    // Predicated region
    $region26: #{conv_lstm_forward.1} parent=1 // pred_check
      _
    $region27: #{conv_lstm_forward.1} parent=1 // pred_check_branch
      %60 = sbr.rel (0) target = $region29
    $region28: #{conv_lstm_forward.1} parent=1 // pred_region
      _
    $region29: #{conv_lstm_forward.1} parent=1 // pred_fallthru
      _
    // Predicated region
    $region30: #{conv_lstm_forward.1} parent=1 // pred_check
      _
    $region31: #{conv_lstm_forward.1} parent=1 // pred_check_branch
      %62 = sbr.rel (0) target = $region33
    $region32: #{conv_lstm_forward.1} parent=1 // pred_region
      _
    $region33: #{conv_lstm_forward.1} parent=1 // pred_fallthru
      _
    // Predicated region
    $region34: #{conv_lstm_forward.1} parent=1 // pred_check
      _
    $region35: #{conv_lstm_forward.1} parent=1 // pred_check_branch
      %64 = sbr.rel (0) target = $region37
    $region36: #{conv_lstm_forward.1} parent=1 // pred_region
      _
    $region37: #{conv_lstm_forward.1} parent=1 // pred_fallthru
      _
    // Predicated region
    $region38: #{conv_lstm_forward.1} parent=1 // pred_check
      _
    $region39: #{conv_lstm_forward.1} parent=1 // pred_check_branch
      %66 = sbr.rel (0) target = $region41
    $region40: #{conv_lstm_forward.1} parent=1 // pred_region
      %67 = dma.done [#allocation3], 10240
    $region41: #{conv_lstm_forward.1} parent=1 // pred_fallthru
      _
    // Predicated region
    $region42: #{conv_lstm_forward.1} parent=1 // pred_check
      _
    $region43: #{conv_lstm_forward.1} parent=1 // pred_check_branch
      %69 = sbr.rel (0) target = $region45
    $region44: #{conv_lstm_forward.1} parent=1 // pred_region
      %70 = dma.done [#allocation6], 8192
    $region45: #{conv_lstm_forward.1} parent=1 // pred_fallthru
      _
    // Predicated region
    $region46: #{conv_lstm_forward.1} parent=1 // pred_check
      _
    $region47: #{conv_lstm_forward.1} parent=1 // pred_check_branch
      %72 = sbr.rel (0) target = $region49
    $region48: #{conv_lstm_forward.1} parent=1 // pred_region
      %73 = dma.done [#allocation6], 8192
    $region49: #{conv_lstm_forward.1} parent=1 // pred_fallthru
      _
    %v74 = vld [vmem:[%s0] sm:$0xff]
    %v75 = vld [vmem:[%s0 + $0x8] sm:$0xff]
    %v76 = vld [vmem:[%s0 + $0x10] sm:$0xff]
    %v77 = vld [vmem:[%s0 + $0x18] sm:$0xff]
    %v78 = vld [vmem:[%s0 + $0x20] sm:$0xff]
    %v79 = vlaneseq
    %v80 = vand.u32 %v79, 127
    %81 = vset.pattern.permute.xlu0 0
    %82 = vperm.xlu0 %81, %v74
    %v83 = vpop.permute.xlu0 %82
    %84 = vset.pattern.permute.xlu0 0
    %85 = vperm.xlu0 %84, %v75
    %v86 = vpop.permute.xlu0 %85
    %87 = vset.pattern.permute.xlu0 0
    %88 = vperm.xlu0 %87, %v76
    %v89 = vpop.permute.xlu0 %88
    %90 = vset.pattern.permute.xlu0 0
    %91 = vperm.xlu0 %90, %v77
    %v92 = vpop.permute.xlu0 %91
    %93 = vset.pattern.permute.xlu0 0
    %94 = vperm.xlu0 %93, %v78
    %v95 = vpop.permute.xlu0 %94
    %vm96 = vcmp.eq.s32.totalorder %v83, %v80
    %vm97 = vcmp.eq.s32.totalorder %v86, %v80
    %vm98 = vcmp.eq.s32.totalorder %v89, %v80
    %vm99 = vcmp.eq.s32.totalorder %v92, %v80
    %vm100 = vcmp.eq.s32.totalorder %v95, %v80
    %v101 = vsel %vm96, 1, 0
    %v102 = vsel %vm97, 1, 0
    %v103 = vsel %vm98, 1, 0
    %v104 = vsel %vm99, 1, 0
    %v105 = vsel %vm100, 1, 0
    %v106 = vcvt.s32.f32 %v101
    %v107 = vcvt.s32.f32 %v102
    %v108 = vcvt.s32.f32 %v103
    %v109 = vcvt.s32.f32 %v104
    %v110 = vcvt.s32.f32 %v105
    %v111 = vld [vmem:[%s1] sm:$0xff]
    %v112 = vld [vmem:[%s1 + $0x8] sm:$0xff]
    %v113 = vld [vmem:[%s1 + $0x10] sm:$0xff]
    %v114 = vld [vmem:[%s1 + $0x18] sm:$0xff]
    %v115 = vld [vmem:[%s1 + $0x20] sm:$0xff]
    %v116 = vld [vmem:[%s1 + $0x28] sm:$0xff]
    %v117 = vld [vmem:[%s1 + $0x30] sm:$0xff]
    %v118 = vld [vmem:[%s1 + $0x38] sm:$0xff]
    %v119 = vld [vmem:[%s1 + $0x40] sm:$0xff]
    %v120 = vld [vmem:[%s1 + $0x48] sm:$0xff]
    %v121 = vld [vmem:[%s1 + $0x50] sm:$0xff]
    %v122 = vld [vmem:[%s1 + $0x58] sm:$0xff]
    %v123 = vld [vmem:[%s1 + $0x60] sm:$0xff]
    %v124 = vld [vmem:[%s1 + $0x68] sm:$0xff]
    %v125 = vld [vmem:[%s1 + $0x70] sm:$0xff]
    %v126 = vld [vmem:[%s1 + $0x78] sm:$0xff]
    %127 = vmatprep.subr.mxu0 0.0
    %128 = vmatpush1.msra.mxu0 %v111
    %129 = vmatprep.subr.mxu0 0.0
    %130 = vmatpush1.msra.mxu0 %v112
    %131 = vmatprep.subr.mxu0 0.0
    %132 = vmatpush1.msra.mxu0 %v113
    %133 = vmatprep.subr.mxu0 0.0
    %134 = vmatpush1.msra.mxu0 %v114
    %135 = vmatprep.subr.mxu0 0.0
    %136 = vmatpush1.msra.mxu0 %v115
    %137 = vmatprep.subr.mxu0 0.0
    %138 = vmatpush1.msra.mxu0 %v116
    %139 = vmatprep.subr.mxu0 0.0
    %140 = vmatpush1.msra.mxu0 %v117
    %141 = vmatprep.subr.mxu0 0.0
    %142 = vmatpush1.msra.mxu0 %v118
    %143 = vmatprep.subr.mxu0 0.0
    %144 = vmatpush1.msra.mxu0 %v119
    %145 = vmatprep.subr.mxu0 0.0
    %146 = vmatpush1.msra.mxu0 %v120
    %147 = vmatprep.subr.mxu0 0.0
    %148 = vmatpush1.msra.mxu0 %v121
    %149 = vmatprep.subr.mxu0 0.0
    %150 = vmatpush1.msra.mxu0 %v122
    %151 = vmatprep.subr.mxu0 0.0
    %152 = vmatpush1.msra.mxu0 %v123
    %153 = vmatprep.subr.mxu0 0.0
    %154 = vmatpush1.msra.mxu0 %v124
    %155 = vmatprep.subr.mxu0 0.0
    %156 = vmatpush1.msra.mxu0 %v125
    %157 = vmatprep.subr.mxu0 0.0
    %158 = vmatpush1.msra.mxu0 %v126
    %159 = vmatprep.subr.mxu0 0.0
    %160 = vmatpush1.msra.mxu0 0.0
    %161 = vmatprep.subr.mxu0 0.0
    %162 = vmatpush1.msra.mxu0 0.0
    %163 = vmatprep.subr.mxu0 0.0
    %164 = vmatpush1.msra.mxu0 0.0
    %165 = vmatprep.subr.mxu0 0.0
    %166 = vmatpush1.msra.mxu0 0.0
    %167 = vmatprep.subr.mxu0 0.0
    %168 = vmatpush1.msra.mxu0 0.0
    %169 = vmatprep.subr.mxu0 0.0
    %170 = vmatpush1.msra.mxu0 0.0
    %171 = vmatprep.subr.mxu0 0.0
    %172 = vmatpush1.msra.mxu0 0.0
    %173 = vmatprep.subr.mxu0 0.0
    %174 = vmatpush1.msra.mxu0 0.0
    %175 = vmatprep.subr.mxu0 0.0
    %176 = vmatpush1.msra.mxu0 0.0
    %177 = vmatprep.subr.mxu0 0.0
    %178 = vmatpush1.msra.mxu0 0.0
    %179 = vmatprep.subr.mxu0 0.0
    %180 = vmatpush1.msra.mxu0 0.0
    %181 = vmatprep.subr.mxu0 0.0
    %182 = vmatpush1.msra.mxu0 0.0
    %183 = vmatprep.subr.mxu0 0.0
    %184 = vmatpush1.msra.mxu0 0.0
    %185 = vmatprep.subr.mxu0 0.0
    %186 = vmatpush1.msra.mxu0 0.0
    %187 = vmatprep.subr.mxu0 0.0
    %188 = vmatpush1.msra.mxu0 0.0
    %189 = vmatprep.subr.mxu0 0.0
    %190 = vmatpush1.msra.mxu0 0.0
    %191 = vmatprep.mubr.f32.mxu0 0.0
    %192 = vmatmul.mubr.f32.gmra.mrb[0].mxu0 %v106
    %v193 = vpop.f32.mrb[0].mxu0
    %v194 = vadd.f32 0.0, %v193
    %v195 = vpop.f32.mrb[0].mxu0
    %196 = vmatprep.mubr.f32.mxu0 0.0
    %197 = vmatmul.mubr.f32.gmra.mrb[0].mxu0 %v107
    %v198 = vpop.f32.mrb[0].mxu0
    %v199 = vadd.f32 0.0, %v198
    %v200 = vpop.f32.mrb[0].mxu0
    %201 = vmatprep.mubr.f32.mxu0 0.0
    %202 = vmatmul.mubr.f32.gmra.mrb[0].mxu0 %v108
    %v203 = vpop.f32.mrb[0].mxu0
    %v204 = vadd.f32 0.0, %v203
    %v205 = vpop.f32.mrb[0].mxu0
    %206 = vmatprep.mubr.f32.mxu0 0.0
    %207 = vmatmul.mubr.f32.gmra.mrb[0].mxu0 %v109
    %v208 = vpop.f32.mrb[0].mxu0
    %v209 = vadd.f32 0.0, %v208
    %v210 = vpop.f32.mrb[0].mxu0
    %211 = vmatprep.mubr.f32.mxu0 0.0
    %212 = vmatmul.mubr.f32.gmra.mrb[0].mxu0 %v110
    %v213 = vpop.f32.mrb[0].mxu0
    %v214 = vadd.f32 0.0, %v213
    %v215 = vpop.f32.mrb[0].mxu0
    %216 = vdwg.mxu0
    %vm220 = vcmask 1043456
    %v221 = vrot.slane %v204, 4
    %v222 = vrot.slane %v209, 4
    %v223 = vsel %vm220, %v221, %v222
    %v224 = vrot.slane %v214, 4
    %v225 = vsel %vm220, %v222, %v224
    %vm230 = vcmask 1046528
    %v231 = vrot.slane %v194, 1
    %v232 = vrot.slane %v199, 1
    %v233 = vsel %vm230, %v231, %v232
    %v234 = vrot.slane %v204, 1
    %v235 = vsel %vm230, %v232, %v234
    %vm238 = vcmask 1042432
    %v239 = vrot.slane %v204, 5
    %v240 = vrot.slane %v209, 5
    %v241 = vsel %vm238, %v239, %v240
    %v242 = vrot.slane %v214, 5
    %v243 = vsel %vm238, %v240, %v242
    %vm246 = vcmask 1045504
    %v247 = vrot.slane %v194, 2
    %v248 = vrot.slane %v199, 2
    %v249 = vsel %vm246, %v247, %v248
    %v250 = vrot.slane %v204, 2
    %v251 = vsel %vm246, %v248, %v250
    %vm254 = vcmask 1041408
    %v255 = vrot.slane %v204, 6
    %v256 = vrot.slane %v209, 6
    %v257 = vsel %vm254, %v255, %v256
    %v258 = vrot.slane %v214, 6
    %v259 = vsel %vm254, %v256, %v258
    %vm262 = vcmask 1044480
    %v263 = vrot.slane %v194, 3
    %v264 = vrot.slane %v199, 3
    %v265 = vsel %vm262, %v263, %v264
    %v266 = vrot.slane %v204, 3
    %v267 = vsel %vm262, %v264, %v266
    %vm270 = vcmask 1040384
    %v271 = vrot.slane %v204, 7
    %v272 = vrot.slane %v209, 7
    %v273 = vsel %vm270, %v271, %v272
    %v274 = vrot.slane %v214, 7
    %v275 = vsel %vm270, %v272, %v274
    %v278 = vrot.slane %v194, 4
    %v279 = vrot.slane %v199, 4
    %v280 = vsel %vm220, %v278, %v279
    %v281 = vsel %vm220, %v279, %v221
    %v284 = vld [vmem:[#allocation2] sm:$0xff]
    %v285 = vld [vmem:[#allocation2 + $0x8] sm:$0xff]
    %v286 = vld [vmem:[#allocation2 + $0x10] sm:$0xff]
    %v287 = vld [vmem:[#allocation2 + $0x18] sm:$0xff]
    %v288 = vld [vmem:[#allocation2 + $0x20] sm:$0xff]
    %v289 = vld [vmem:[#allocation2 + $0x28] sm:$0xff]
    %v290 = vld [vmem:[#allocation2 + $0x30] sm:$0xff]
    %v291 = vld [vmem:[#allocation2 + $0x38] sm:$0xff]
    %v292 = vld [vmem:[#allocation2 + $0x40] sm:$0xff]
    %v293 = vld [vmem:[#allocation2 + $0x48] sm:$0xff]
    %v294 = vld [vmem:[#allocation2 + $0x50] sm:$0xff]
    %v295 = vld [vmem:[#allocation2 + $0x58] sm:$0xff]
    %v296 = vld [vmem:[#allocation2 + $0x60] sm:$0xff]
    %v297 = vld [vmem:[#allocation2 + $0x68] sm:$0xff]
    %v298 = vld [vmem:[#allocation2 + $0x70] sm:$0xff]
    %v299 = vld [vmem:[#allocation2 + $0x78] sm:$0xff]
    %v300 = vld [vmem:[#allocation2 + $0x80] sm:$0xff]
    %v301 = vld [vmem:[#allocation2 + $0x88] sm:$0xff]
    %v302 = vld [vmem:[#allocation2 + $0x90] sm:$0xff]
    %v303 = vld [vmem:[#allocation2 + $0x98] sm:$0xff]
    %v304 = vld [vmem:[#allocation2 + $0xa0] sm:$0xff]
    %v305 = vld [vmem:[#allocation2 + $0xa8] sm:$0xff]
    %v306 = vld [vmem:[#allocation2 + $0xb0] sm:$0xff]
    %v307 = vld [vmem:[#allocation2 + $0xb8] sm:$0xff]
    %v308 = vld [vmem:[#allocation2 + $0xc0] sm:$0xff]
    %v309 = vld [vmem:[#allocation2 + $0xc8] sm:$0xff]
    %v310 = vld [vmem:[#allocation2 + $0xd0] sm:$0xff]
    %v311 = vld [vmem:[#allocation2 + $0xd8] sm:$0xff]
    %v312 = vld [vmem:[#allocation2 + $0xe0] sm:$0xff]
    %v313 = vld [vmem:[#allocation2 + $0xe8] sm:$0xff]
    %v314 = vld [vmem:[#allocation2 + $0xf0] sm:$0xff]
    %v315 = vld [vmem:[#allocation2 + $0xf8] sm:$0xff]
    %v316 = vld [vmem:[#allocation2 + $0x100] sm:$0xff]
    %v317 = vld [vmem:[#allocation2 + $0x108] sm:$0xff]
    %v318 = vld [vmem:[#allocation2 + $0x110] sm:$0xff]
    %v319 = vld [vmem:[#allocation2 + $0x118] sm:$0xff]
    %v320 = vld [vmem:[#allocation2 + $0x120] sm:$0xff]
    %v321 = vld [vmem:[#allocation2 + $0x128] sm:$0xff]
    %v322 = vld [vmem:[#allocation2 + $0x130] sm:$0xff]
    %v323 = vld [vmem:[#allocation2 + $0x138] sm:$0xff]
    %v324 = vld [vmem:[#allocation2 + $0x140] sm:$0xff]
    %v325 = vld [vmem:[#allocation2 + $0x148] sm:$0xff]
    %v326 = vld [vmem:[#allocation2 + $0x150] sm:$0xff]
    %v327 = vld [vmem:[#allocation2 + $0x158] sm:$0xff]
    %v328 = vld [vmem:[#allocation2 + $0x160] sm:$0xff]
    %v329 = vld [vmem:[#allocation2 + $0x168] sm:$0xff]
    %v330 = vld [vmem:[#allocation2 + $0x170] sm:$0xff]
    %v331 = vld [vmem:[#allocation2 + $0x178] sm:$0xff]
    %v332 = vld [vmem:[#allocation2 + $0x180] sm:$0xff]
    %v333 = vld [vmem:[#allocation2 + $0x188] sm:$0xff]
    %v334 = vld [vmem:[#allocation2 + $0x190] sm:$0xff]
    %v335 = vld [vmem:[#allocation2 + $0x198] sm:$0xff]
    %v336 = vld [vmem:[#allocation2 + $0x1a0] sm:$0xff]
    %v337 = vld [vmem:[#allocation2 + $0x1a8] sm:$0xff]
    %v338 = vld [vmem:[#allocation2 + $0x1b0] sm:$0xff]
    %v339 = vld [vmem:[#allocation2 + $0x1b8] sm:$0xff]
    %v340 = vld [vmem:[#allocation2 + $0x1c0] sm:$0xff]
    %v341 = vld [vmem:[#allocation2 + $0x1c8] sm:$0xff]
    %v342 = vld [vmem:[#allocation2 + $0x1d0] sm:$0xff]
    %v343 = vld [vmem:[#allocation2 + $0x1d8] sm:$0xff]
    %v344 = vld [vmem:[#allocation2 + $0x1e0] sm:$0xff]
    %v345 = vld [vmem:[#allocation2 + $0x1e8] sm:$0xff]
    %v346 = vld [vmem:[#allocation2 + $0x1f0] sm:$0xff]
    %v347 = vld [vmem:[#allocation2 + $0x1f8] sm:$0xff]
    %v348 = vld [vmem:[#allocation2 + $0x200] sm:$0xff]
    %v349 = vld [vmem:[#allocation2 + $0x208] sm:$0xff]
    %v350 = vld [vmem:[#allocation2 + $0x210] sm:$0xff]
    %v351 = vld [vmem:[#allocation2 + $0x218] sm:$0xff]
    %v352 = vld [vmem:[#allocation2 + $0x220] sm:$0xff]
    %v353 = vld [vmem:[#allocation2 + $0x228] sm:$0xff]
    %v354 = vld [vmem:[#allocation2 + $0x230] sm:$0xff]
    %v355 = vld [vmem:[#allocation2 + $0x238] sm:$0xff]
    %v356 = vld [vmem:[#allocation2 + $0x240] sm:$0xff]
    %v357 = vld [vmem:[#allocation2 + $0x248] sm:$0xff]
    %v358 = vld [vmem:[#allocation2 + $0x250] sm:$0xff]
    %v359 = vld [vmem:[#allocation2 + $0x258] sm:$0xff]
    %v360 = vld [vmem:[#allocation2 + $0x260] sm:$0xff]
    %v361 = vld [vmem:[#allocation2 + $0x268] sm:$0xff]
    %v362 = vld [vmem:[#allocation2 + $0x270] sm:$0xff]
    %v363 = vld [vmem:[#allocation2 + $0x278] sm:$0xff]
    %v364 = vld [vmem:[%s3] sm:$0x1]
    %v366 = vlaneseq
    %v367 = vshrl.u32 %v366, 7
    %v368 = vsub.s32 0, %v367
    %v369 = vrot.slane %v364, %v368
    %371 = vmatprep.subr.mxu0 0.0
    %372 = vmatpush1.msra.mxu0 %v284
    %373 = vmatprep.subr.mxu0 0.0
    %374 = vmatpush1.msra.mxu0 %v285
    %375 = vmatprep.subr.mxu0 0.0
    %376 = vmatpush1.msra.mxu0 %v286
    %377 = vmatprep.subr.mxu0 0.0
    %378 = vmatpush1.msra.mxu0 %v287
    %379 = vmatprep.subr.mxu0 0.0
    %380 = vmatpush1.msra.mxu0 %v288
    %381 = vmatprep.subr.mxu0 0.0
    %382 = vmatpush1.msra.mxu0 %v289
    %383 = vmatprep.subr.mxu0 0.0
    %384 = vmatpush1.msra.mxu0 %v290
    %385 = vmatprep.subr.mxu0 0.0
    %386 = vmatpush1.msra.mxu0 %v291
    %387 = vmatprep.subr.mxu0 0.0
    %388 = vmatpush1.msra.mxu0 %v292
    %389 = vmatprep.subr.mxu0 0.0
    %390 = vmatpush1.msra.mxu0 %v293
    %391 = vmatprep.subr.mxu0 0.0
    %392 = vmatpush1.msra.mxu0 %v294
    %393 = vmatprep.subr.mxu0 0.0
    %394 = vmatpush1.msra.mxu0 %v295
    %395 = vmatprep.subr.mxu0 0.0
    %396 = vmatpush1.msra.mxu0 %v296
    %397 = vmatprep.subr.mxu0 0.0
    %398 = vmatpush1.msra.mxu0 %v297
    %399 = vmatprep.subr.mxu0 0.0
    %400 = vmatpush1.msra.mxu0 %v298
    %401 = vmatprep.subr.mxu0 0.0
    %402 = vmatpush1.msra.mxu0 %v299
    %403 = vmatprep.subr.mxu0 0.0
    %404 = vmatpush1.msra.mxu0 %v300
    %405 = vmatprep.subr.mxu0 0.0
    %406 = vmatpush1.msra.mxu0 %v301
    %407 = vmatprep.subr.mxu0 0.0
    %408 = vmatpush1.msra.mxu0 %v302
    %409 = vmatprep.subr.mxu0 0.0
    %410 = vmatpush1.msra.mxu0 %v303
    %411 = vmatprep.subr.mxu0 0.0
    %412 = vmatpush1.msra.mxu0 %v304
    %413 = vmatprep.subr.mxu0 0.0
    %414 = vmatpush1.msra.mxu0 %v305
    %415 = vmatprep.subr.mxu0 0.0
    %416 = vmatpush1.msra.mxu0 %v306
    %417 = vmatprep.subr.mxu0 0.0
    %418 = vmatpush1.msra.mxu0 %v307
    %419 = vmatprep.subr.mxu0 0.0
    %420 = vmatpush1.msra.mxu0 %v308
    %421 = vmatprep.subr.mxu0 0.0
    %422 = vmatpush1.msra.mxu0 %v309
    %423 = vmatprep.subr.mxu0 0.0
    %424 = vmatpush1.msra.mxu0 %v310
    %425 = vmatprep.subr.mxu0 0.0
    %426 = vmatpush1.msra.mxu0 %v311
    %427 = vmatprep.subr.mxu0 0.0
    %428 = vmatpush1.msra.mxu0 %v312
    %429 = vmatprep.subr.mxu0 0.0
    %430 = vmatpush1.msra.mxu0 %v313
    %431 = vmatprep.subr.mxu0 0.0
    %432 = vmatpush1.msra.mxu0 %v314
    %433 = vmatprep.subr.mxu0 0.0
    %434 = vmatpush1.msra.mxu0 %v315
    %435 = vmatprep.mubr.f32.mxu0 %v233
    %436 = vmatmul.mubr.f32.gmra.mrb[0].mxu0 %v194
    %v437 = vpop.f32.mrb[0].mxu0
    %v438 = vadd.f32 %v369, %v437
    %v439 = vpop.f32.mrb[0].mxu0
    %440 = vmatprep.mubr.f32.mxu0 %v235
    %441 = vmatmul.mubr.f32.gmra.mrb[0].mxu0 %v199
    %v442 = vpop.f32.mrb[0].mxu0
    %v443 = vadd.f32 %v369, %v442
    %v444 = vpop.f32.mrb[0].mxu0
    %445 = vmatprep.mubr.f32.mxu0 %v241
    %446 = vmatmul.mubr.f32.gmra.mrb[0].mxu0 %v223
    %v447 = vpop.f32.mrb[0].mxu0
    %v448 = vadd.f32 %v369, %v447
    %v449 = vpop.f32.mrb[0].mxu0
    %450 = vmatprep.mubr.f32.mxu0 %v243
    %451 = vmatmul.mubr.f32.gmra.mrb[0].mxu0 %v225
    %v452 = vpop.f32.mrb[0].mxu0
    %v453 = vadd.f32 %v369, %v452
    %v454 = vpop.f32.mrb[0].mxu0
    %455 = vdwg.mxu0
    %456 = vmatprep.subr.mxu0 0.0
    %457 = vmatpush1.msra.mxu0 %v316
    %458 = vmatprep.subr.mxu0 0.0
    %459 = vmatpush1.msra.mxu0 %v317
    %460 = vmatprep.subr.mxu0 0.0
    %461 = vmatpush1.msra.mxu0 %v318
    %462 = vmatprep.subr.mxu0 0.0
    %463 = vmatpush1.msra.mxu0 %v319
    %464 = vmatprep.subr.mxu0 0.0
    %465 = vmatpush1.msra.mxu0 %v320
    %466 = vmatprep.subr.mxu0 0.0
    %467 = vmatpush1.msra.mxu0 %v321
    %468 = vmatprep.subr.mxu0 0.0
    %469 = vmatpush1.msra.mxu0 %v322
    %470 = vmatprep.subr.mxu0 0.0
    %471 = vmatpush1.msra.mxu0 %v323
    %472 = vmatprep.subr.mxu0 0.0
    %473 = vmatpush1.msra.mxu0 %v324
    %474 = vmatprep.subr.mxu0 0.0
    %475 = vmatpush1.msra.mxu0 %v325
    %476 = vmatprep.subr.mxu0 0.0
    %477 = vmatpush1.msra.mxu0 %v326
    %478 = vmatprep.subr.mxu0 0.0
    %479 = vmatpush1.msra.mxu0 %v327
    %480 = vmatprep.subr.mxu0 0.0
    %481 = vmatpush1.msra.mxu0 %v328
    %482 = vmatprep.subr.mxu0 0.0
    %483 = vmatpush1.msra.mxu0 %v329
    %484 = vmatprep.subr.mxu0 0.0
    %485 = vmatpush1.msra.mxu0 %v330
    %486 = vmatprep.subr.mxu0 0.0
    %487 = vmatpush1.msra.mxu0 %v331
    %488 = vmatprep.subr.mxu0 0.0
    %489 = vmatpush1.msra.mxu0 %v332
    %490 = vmatprep.subr.mxu0 0.0
    %491 = vmatpush1.msra.mxu0 %v333
    %492 = vmatprep.subr.mxu0 0.0
    %493 = vmatpush1.msra.mxu0 %v334
    %494 = vmatprep.subr.mxu0 0.0
    %495 = vmatpush1.msra.mxu0 %v335
    %496 = vmatprep.subr.mxu0 0.0
    %497 = vmatpush1.msra.mxu0 %v336
    %498 = vmatprep.subr.mxu0 0.0
    %499 = vmatpush1.msra.mxu0 %v337
    %500 = vmatprep.subr.mxu0 0.0
    %501 = vmatpush1.msra.mxu0 %v338
    %502 = vmatprep.subr.mxu0 0.0
    %503 = vmatpush1.msra.mxu0 %v339
    %504 = vmatprep.subr.mxu0 0.0
    %505 = vmatpush1.msra.mxu0 %v340
    %506 = vmatprep.subr.mxu0 0.0
    %507 = vmatpush1.msra.mxu0 %v341
    %508 = vmatprep.subr.mxu0 0.0
    %509 = vmatpush1.msra.mxu0 %v342
    %510 = vmatprep.subr.mxu0 0.0
    %511 = vmatpush1.msra.mxu0 %v343
    %512 = vmatprep.subr.mxu0 0.0
    %513 = vmatpush1.msra.mxu0 %v344
    %514 = vmatprep.subr.mxu0 0.0
    %515 = vmatpush1.msra.mxu0 %v345
    %516 = vmatprep.subr.mxu0 0.0
    %517 = vmatpush1.msra.mxu0 %v346
    %518 = vmatprep.subr.mxu0 0.0
    %519 = vmatpush1.msra.mxu0 %v347
    %520 = vmatprep.mubr.f32.mxu0 %v265
    %521 = vmatmul.mubr.f32.gmra.mrb[0].mxu0 %v249
    %v522 = vpop.f32.mrb[0].mxu0
    %v523 = vadd.f32 %v438, %v522
    %v524 = vpop.f32.mrb[0].mxu0
    %525 = vmatprep.mubr.f32.mxu0 %v267
    %526 = vmatmul.mubr.f32.gmra.mrb[0].mxu0 %v251
    %v527 = vpop.f32.mrb[0].mxu0
    %v528 = vadd.f32 %v443, %v527
    %v529 = vpop.f32.mrb[0].mxu0
    %530 = vmatprep.mubr.f32.mxu0 %v273
    %531 = vmatmul.mubr.f32.gmra.mrb[0].mxu0 %v257
    %v532 = vpop.f32.mrb[0].mxu0
    %v533 = vadd.f32 %v448, %v532
    %v534 = vpop.f32.mrb[0].mxu0
    %535 = vmatprep.mubr.f32.mxu0 %v275
    %536 = vmatmul.mubr.f32.gmra.mrb[0].mxu0 %v259
    %v537 = vpop.f32.mrb[0].mxu0
    %v538 = vadd.f32 %v453, %v537
    %v539 = vpop.f32.mrb[0].mxu0
    %540 = vdwg.mxu0
    %541 = vmatprep.subr.mxu0 0.0
    %542 = vmatpush1.msra.mxu0 %v348
    %543 = vmatprep.subr.mxu0 0.0
    %544 = vmatpush1.msra.mxu0 %v349
    %545 = vmatprep.subr.mxu0 0.0
    %546 = vmatpush1.msra.mxu0 %v350
    %547 = vmatprep.subr.mxu0 0.0
    %548 = vmatpush1.msra.mxu0 %v351
    %549 = vmatprep.subr.mxu0 0.0
    %550 = vmatpush1.msra.mxu0 %v352
    %551 = vmatprep.subr.mxu0 0.0
    %552 = vmatpush1.msra.mxu0 %v353
    %553 = vmatprep.subr.mxu0 0.0
    %554 = vmatpush1.msra.mxu0 %v354
    %555 = vmatprep.subr.mxu0 0.0
    %556 = vmatpush1.msra.mxu0 %v355
    %557 = vmatprep.subr.mxu0 0.0
    %558 = vmatpush1.msra.mxu0 %v356
    %559 = vmatprep.subr.mxu0 0.0
    %560 = vmatpush1.msra.mxu0 %v357
    %561 = vmatprep.subr.mxu0 0.0
    %562 = vmatpush1.msra.mxu0 %v358
    %563 = vmatprep.subr.mxu0 0.0
    %564 = vmatpush1.msra.mxu0 %v359
    %565 = vmatprep.subr.mxu0 0.0
    %566 = vmatpush1.msra.mxu0 %v360
    %567 = vmatprep.subr.mxu0 0.0
    %568 = vmatpush1.msra.mxu0 %v361
    %569 = vmatprep.subr.mxu0 0.0
    %570 = vmatpush1.msra.mxu0 %v362
    %571 = vmatprep.subr.mxu0 0.0
    %572 = vmatpush1.msra.mxu0 %v363
    %573 = vmatprep.subr.mxu0 0.0
    %574 = vmatpush1.msra.mxu0 0.0
    %575 = vmatprep.subr.mxu0 0.0
    %576 = vmatpush1.msra.mxu0 0.0
    %577 = vmatprep.subr.mxu0 0.0
    %578 = vmatpush1.msra.mxu0 0.0
    %579 = vmatprep.subr.mxu0 0.0
    %580 = vmatpush1.msra.mxu0 0.0
    %581 = vmatprep.subr.mxu0 0.0
    %582 = vmatpush1.msra.mxu0 0.0
    %583 = vmatprep.subr.mxu0 0.0
    %584 = vmatpush1.msra.mxu0 0.0
    %585 = vmatprep.subr.mxu0 0.0
    %586 = vmatpush1.msra.mxu0 0.0
    %587 = vmatprep.subr.mxu0 0.0
    %588 = vmatpush1.msra.mxu0 0.0
    %589 = vmatprep.subr.mxu0 0.0
    %590 = vmatpush1.msra.mxu0 0.0
    %591 = vmatprep.subr.mxu0 0.0
    %592 = vmatpush1.msra.mxu0 0.0
    %593 = vmatprep.subr.mxu0 0.0
    %594 = vmatpush1.msra.mxu0 0.0
    %595 = vmatprep.subr.mxu0 0.0
    %596 = vmatpush1.msra.mxu0 0.0
    %597 = vmatprep.subr.mxu0 0.0
    %598 = vmatpush1.msra.mxu0 0.0
    %599 = vmatprep.subr.mxu0 0.0
    %600 = vmatpush1.msra.mxu0 0.0
    %601 = vmatprep.subr.mxu0 0.0
    %602 = vmatpush1.msra.mxu0 0.0
    %603 = vmatprep.subr.mxu0 0.0
    %604 = vmatpush1.msra.mxu0 0.0
    %605 = vmatprep.mubr.f32.mxu0 0.0
    %606 = vmatmul.mubr.f32.gmra.mrb[0].mxu0 %v280
    %v607 = vpop.f32.mrb[0].mxu0
    %v608 = vadd.f32 %v523, %v607
    %v609 = vpop.f32.mrb[0].mxu0
    %610 = vmatprep.mubr.f32.mxu0 0.0
    %611 = vmatmul.mubr.f32.gmra.mrb[0].mxu0 %v281
    %v612 = vpop.f32.mrb[0].mxu0
    %v613 = vadd.f32 %v528, %v612
    %v614 = vpop.f32.mrb[0].mxu0
    %615 = vmatprep.mubr.f32.mxu0 0.0
    %616 = vmatmul.mubr.f32.gmra.mrb[0].mxu0 %v209
    %v617 = vpop.f32.mrb[0].mxu0
    %v618 = vadd.f32 %v533, %v617
    %v619 = vpop.f32.mrb[0].mxu0
    %620 = vmatprep.mubr.f32.mxu0 0.0
    %621 = vmatmul.mubr.f32.gmra.mrb[0].mxu0 %v214
    %v622 = vpop.f32.mrb[0].mxu0
    %v623 = vadd.f32 %v538, %v622
    %v624 = vpop.f32.mrb[0].mxu0
    %625 = vdwg.mxu0
    %v626 = vmax.f32 %v608, 0.0
    %v627 = vmax.f32 %v613, 0.0
    %v628 = vmax.f32 %v618, 0.0
    %v629 = vmax.f32 %v623, 0.0
    %v630 = vsel %vm220, %v626, -inf
    %v631 = vrot.slane %v630, 4
    %v632 = vmax.f32 %v630, %v631
    %v633 = vrot.slane %v632, 2
    %v634 = vmax.f32 %v632, %v633
    %v635 = vrot.slane %v634, 1
    %v636 = vmax.f32 %v634, %v635
    %v637 = vsel %vm220, %v628, -inf
    %v638 = vrot.slane %v637, 4
    %v639 = vmax.f32 %v637, %v638
    %v640 = vrot.slane %v639, 2
    %v641 = vmax.f32 %v639, %v640
    %v642 = vrot.slane %v641, 1
    %v643 = vmax.f32 %v641, %v642
    %vm644 = vcmask 1047556
    %v645 = vsel %vm644, %v626, -inf
    %v646 = vrot.slane %v645, 4
    %v647 = vmax.f32 %v645, %v646
    %v648 = vrot.slane %v647, 2
    %v649 = vmax.f32 %v647, %v648
    %v650 = vrot.slane %v649, 1
    %v651 = vmax.f32 %v649, %v650
    %v652 = vsel %vm644, %v628, -inf
    %v653 = vrot.slane %v652, 4
    %v654 = vmax.f32 %v652, %v653
    %v655 = vrot.slane %v654, 2
    %v656 = vmax.f32 %v654, %v655
    %v657 = vrot.slane %v656, 1
    %v658 = vmax.f32 %v656, %v657
    %v659 = vsel %vm220, %v627, -inf
    %v660 = vrot.slane %v659, 4
    %v661 = vmax.f32 %v659, %v660
    %v662 = vrot.slane %v661, 2
    %v663 = vmax.f32 %v661, %v662
    %v664 = vrot.slane %v663, 1
    %v665 = vmax.f32 %v663, %v664
    %v666 = vsel %vm220, %v629, -inf
    %v667 = vrot.slane %v666, 4
    %v668 = vmax.f32 %v666, %v667
    %v669 = vrot.slane %v668, 2
    %v670 = vmax.f32 %v668, %v669
    %v671 = vrot.slane %v670, 1
    %v672 = vmax.f32 %v670, %v671
    %v673 = vsel %vm644, %v627, -inf
    %v674 = vrot.slane %v673, 4
    %v675 = vmax.f32 %v673, %v674
    %v676 = vrot.slane %v675, 2
    %v677 = vmax.f32 %v675, %v676
    %v678 = vrot.slane %v677, 1
    %v679 = vmax.f32 %v677, %v678
    %v680 = vsel %vm644, %v629, -inf
    %v681 = vrot.slane %v680, 4
    %v682 = vmax.f32 %v680, %v681
    %v683 = vrot.slane %v682, 2
    %v684 = vmax.f32 %v682, %v683
    %v685 = vrot.slane %v684, 1
    %v686 = vmax.f32 %v684, %v685
    %v687 = vsel %vm270, %v636, %v643
    %v688 = vsel %vm254, %v687, %v651
    %v689 = vsel %vm238, %v688, %v658
    %v690 = vsel %vm220, %v689, %v665
    %v691 = vsel %vm262, %v690, %v672
    %v692 = vsel %vm246, %v691, %v679
    %v693 = vsel %vm230, %v692, %v686
    %v694 = vld [vmem:[#allocation5] sm:$0xff]
    %v695 = vld [vmem:[#allocation5 + $0x8] sm:$0xff]
    %v696 = vld [vmem:[#allocation5 + $0x10] sm:$0xff]
    %v697 = vld [vmem:[#allocation5 + $0x18] sm:$0xff]
    %v698 = vld [vmem:[#allocation5 + $0x20] sm:$0xff]
    %v699 = vld [vmem:[#allocation5 + $0x28] sm:$0xff]
    %v700 = vld [vmem:[#allocation5 + $0x30] sm:$0xff]
    %v701 = vld [vmem:[#allocation5 + $0x38] sm:$0xff]
    %v702 = vld [vmem:[#allocation5 + $0x40] sm:$0xff]
    %v703 = vld [vmem:[#allocation5 + $0x48] sm:$0xff]
    %v704 = vld [vmem:[#allocation5 + $0x50] sm:$0xff]
    %v705 = vld [vmem:[#allocation5 + $0x58] sm:$0xff]
    %v706 = vld [vmem:[#allocation5 + $0x60] sm:$0xff]
    %v707 = vld [vmem:[#allocation5 + $0x68] sm:$0xff]
    %v708 = vld [vmem:[#allocation5 + $0x70] sm:$0xff]
    %v709 = vld [vmem:[#allocation5 + $0x78] sm:$0xff]
    %v710 = vld [vmem:[#allocation5 + $0x80] sm:$0xff]
    %v711 = vld [vmem:[#allocation5 + $0x88] sm:$0xff]
    %v712 = vld [vmem:[#allocation5 + $0x90] sm:$0xff]
    %v713 = vld [vmem:[#allocation5 + $0x98] sm:$0xff]
    %v714 = vld [vmem:[#allocation5 + $0xa0] sm:$0xff]
    %v715 = vld [vmem:[#allocation5 + $0xa8] sm:$0xff]
    %v716 = vld [vmem:[#allocation5 + $0xb0] sm:$0xff]
    %v717 = vld [vmem:[#allocation5 + $0xb8] sm:$0xff]
    %v718 = vld [vmem:[#allocation5 + $0xc0] sm:$0xff]
    %v719 = vld [vmem:[#allocation5 + $0xc8] sm:$0xff]
    %v720 = vld [vmem:[#allocation5 + $0xd0] sm:$0xff]
    %v721 = vld [vmem:[#allocation5 + $0xd8] sm:$0xff]
    %v722 = vld [vmem:[#allocation5 + $0xe0] sm:$0xff]
    %v723 = vld [vmem:[#allocation5 + $0xe8] sm:$0xff]
    %v724 = vld [vmem:[#allocation5 + $0xf0] sm:$0xff]
    %v725 = vld [vmem:[#allocation5 + $0xf8] sm:$0xff]
    %v726 = vld [vmem:[#allocation5 + $0x100] sm:$0xff]
    %v727 = vld [vmem:[#allocation5 + $0x108] sm:$0xff]
    %v728 = vld [vmem:[#allocation5 + $0x110] sm:$0xff]
    %v729 = vld [vmem:[#allocation5 + $0x118] sm:$0xff]
    %v730 = vld [vmem:[#allocation5 + $0x120] sm:$0xff]
    %v731 = vld [vmem:[#allocation5 + $0x128] sm:$0xff]
    %v732 = vld [vmem:[#allocation5 + $0x130] sm:$0xff]
    %v733 = vld [vmem:[#allocation5 + $0x138] sm:$0xff]
    %v734 = vld [vmem:[#allocation5 + $0x140] sm:$0xff]
    %v735 = vld [vmem:[#allocation5 + $0x148] sm:$0xff]
    %v736 = vld [vmem:[#allocation5 + $0x150] sm:$0xff]
    %v737 = vld [vmem:[#allocation5 + $0x158] sm:$0xff]
    %v738 = vld [vmem:[#allocation5 + $0x160] sm:$0xff]
    %v739 = vld [vmem:[#allocation5 + $0x168] sm:$0xff]
    %v740 = vld [vmem:[#allocation5 + $0x170] sm:$0xff]
    %v741 = vld [vmem:[#allocation5 + $0x178] sm:$0xff]
    %v742 = vld [vmem:[#allocation5 + $0x180] sm:$0xff]
    %v743 = vld [vmem:[#allocation5 + $0x188] sm:$0xff]
    %v744 = vld [vmem:[#allocation5 + $0x190] sm:$0xff]
    %v745 = vld [vmem:[#allocation5 + $0x198] sm:$0xff]
    %v746 = vld [vmem:[#allocation5 + $0x1a0] sm:$0xff]
    %v747 = vld [vmem:[#allocation5 + $0x1a8] sm:$0xff]
    %v748 = vld [vmem:[#allocation5 + $0x1b0] sm:$0xff]
    %v749 = vld [vmem:[#allocation5 + $0x1b8] sm:$0xff]
    %v750 = vld [vmem:[#allocation5 + $0x1c0] sm:$0xff]
    %v751 = vld [vmem:[#allocation5 + $0x1c8] sm:$0xff]
    %v752 = vld [vmem:[#allocation5 + $0x1d0] sm:$0xff]
    %v753 = vld [vmem:[#allocation5 + $0x1d8] sm:$0xff]
    %v754 = vld [vmem:[#allocation5 + $0x1e0] sm:$0xff]
    %v755 = vld [vmem:[#allocation5 + $0x1e8] sm:$0xff]
    %v756 = vld [vmem:[#allocation5 + $0x1f0] sm:$0xff]
    %v757 = vld [vmem:[#allocation5 + $0x1f8] sm:$0xff]
    %v758 = vld [vmem:[%s6] sm:$0xf]
    %v760 = vlaneseq
    %v761 = vshrl.u32 %v760, 7
    %v762 = vsub.s32 0, %v761
    %v763 = vrot.slane %v758, %v762
    %v764 = vlaneseq
    %v765 = vshrl.u32 %v764, 7
    %v766 = vsub.s32 1, %v765
    %v767 = vrot.slane %v758, %v766
    %v768 = vlaneseq
    %v769 = vshrl.u32 %v768, 7
    %v770 = vsub.s32 2, %v769
    %v771 = vrot.slane %v758, %v770
    %v772 = vlaneseq
    %v773 = vshrl.u32 %v772, 7
    %v774 = vsub.s32 3, %v773
    %v775 = vrot.slane %v758, %v774
    %780 = vmatprep.subr.mxu0 %v695
    %781 = vmatpush1.msra.mxu0 %v694
    %782 = vmatprep.subr.mxu0 %v699
    %783 = vmatpush1.msra.mxu0 %v698
    %784 = vmatprep.subr.mxu0 %v703
    %785 = vmatpush1.msra.mxu0 %v702
    %786 = vmatprep.subr.mxu0 %v707
    %787 = vmatpush1.msra.mxu0 %v706
    %788 = vmatprep.subr.mxu0 %v711
    %789 = vmatpush1.msra.mxu0 %v710
    %790 = vmatprep.subr.mxu0 %v715
    %791 = vmatpush1.msra.mxu0 %v714
    %792 = vmatprep.subr.mxu0 %v719
    %793 = vmatpush1.msra.mxu0 %v718
    %794 = vmatprep.subr.mxu0 %v723
    %795 = vmatpush1.msra.mxu0 %v722
    %796 = vmatprep.subr.mxu0 %v727
    %797 = vmatpush1.msra.mxu0 %v726
    %798 = vmatprep.subr.mxu0 %v731
    %799 = vmatpush1.msra.mxu0 %v730
    %800 = vmatprep.subr.mxu0 %v735
    %801 = vmatpush1.msra.mxu0 %v734
    %802 = vmatprep.subr.mxu0 %v739
    %803 = vmatpush1.msra.mxu0 %v738
    %804 = vmatprep.subr.mxu0 %v743
    %805 = vmatpush1.msra.mxu0 %v742
    %806 = vmatprep.subr.mxu0 %v747
    %807 = vmatpush1.msra.mxu0 %v746
    %808 = vmatprep.subr.mxu0 %v751
    %809 = vmatpush1.msra.mxu0 %v750
    %810 = vmatprep.subr.mxu0 %v755
    %811 = vmatpush1.msra.mxu0 %v754
    %812 = vmatprep.subr.mxu0 0.0
    %813 = vmatpush1.msra.mxu0 0.0
    %814 = vmatprep.subr.mxu0 0.0
    %815 = vmatpush1.msra.mxu0 0.0
    %816 = vmatprep.subr.mxu0 0.0
    %817 = vmatpush1.msra.mxu0 0.0
    %818 = vmatprep.subr.mxu0 0.0
    %819 = vmatpush1.msra.mxu0 0.0
    %820 = vmatprep.subr.mxu0 0.0
    %821 = vmatpush1.msra.mxu0 0.0
    %822 = vmatprep.subr.mxu0 0.0
    %823 = vmatpush1.msra.mxu0 0.0
    %824 = vmatprep.subr.mxu0 0.0
    %825 = vmatpush1.msra.mxu0 0.0
    %826 = vmatprep.subr.mxu0 0.0
    %827 = vmatpush1.msra.mxu0 0.0
    %828 = vmatprep.subr.mxu0 0.0
    %829 = vmatpush1.msra.mxu0 0.0
    %830 = vmatprep.subr.mxu0 0.0
    %831 = vmatpush1.msra.mxu0 0.0
    %832 = vmatprep.subr.mxu0 0.0
    %833 = vmatpush1.msra.mxu0 0.0
    %834 = vmatprep.subr.mxu0 0.0
    %835 = vmatpush1.msra.mxu0 0.0
    %836 = vmatprep.subr.mxu0 0.0
    %837 = vmatpush1.msra.mxu0 0.0
    %838 = vmatprep.subr.mxu0 0.0
    %839 = vmatpush1.msra.mxu0 0.0
    %840 = vmatprep.subr.mxu0 0.0
    %841 = vmatpush1.msra.mxu0 0.0
    %842 = vmatprep.subr.mxu0 0.0
    %843 = vmatpush1.msra.mxu0 0.0
    %844 = vmatprep.mubr.f32.mxu0 0.0
    %845 = vmatmul.mubr.f32.gmra.mrb[0].mxu0 %v693
    %v846 = vpop.f32.mrb[0].mxu0
    %v847 = vadd.f32 %v763, %v846
    %v848 = vpop.f32.mrb[0].mxu0
    %v849 = vadd.f32 %v767, %v848
    %850 = vdwg.mxu0
    %851 = vmatprep.subr.mxu0 %v697
    %852 = vmatpush1.msra.mxu0 %v696
    %853 = vmatprep.subr.mxu0 %v701
    %854 = vmatpush1.msra.mxu0 %v700
    %855 = vmatprep.subr.mxu0 %v705
    %856 = vmatpush1.msra.mxu0 %v704
    %857 = vmatprep.subr.mxu0 %v709
    %858 = vmatpush1.msra.mxu0 %v708
    %859 = vmatprep.subr.mxu0 %v713
    %860 = vmatpush1.msra.mxu0 %v712
    %861 = vmatprep.subr.mxu0 %v717
    %862 = vmatpush1.msra.mxu0 %v716
    %863 = vmatprep.subr.mxu0 %v721
    %864 = vmatpush1.msra.mxu0 %v720
    %865 = vmatprep.subr.mxu0 %v725
    %866 = vmatpush1.msra.mxu0 %v724
    %867 = vmatprep.subr.mxu0 %v729
    %868 = vmatpush1.msra.mxu0 %v728
    %869 = vmatprep.subr.mxu0 %v733
    %870 = vmatpush1.msra.mxu0 %v732
    %871 = vmatprep.subr.mxu0 %v737
    %872 = vmatpush1.msra.mxu0 %v736
    %873 = vmatprep.subr.mxu0 %v741
    %874 = vmatpush1.msra.mxu0 %v740
    %875 = vmatprep.subr.mxu0 %v745
    %876 = vmatpush1.msra.mxu0 %v744
    %877 = vmatprep.subr.mxu0 %v749
    %878 = vmatpush1.msra.mxu0 %v748
    %879 = vmatprep.subr.mxu0 %v753
    %880 = vmatpush1.msra.mxu0 %v752
    %881 = vmatprep.subr.mxu0 %v757
    %882 = vmatpush1.msra.mxu0 %v756
    %883 = vmatprep.subr.mxu0 0.0
    %884 = vmatpush1.msra.mxu0 0.0
    %885 = vmatprep.subr.mxu0 0.0
    %886 = vmatpush1.msra.mxu0 0.0
    %887 = vmatprep.subr.mxu0 0.0
    %888 = vmatpush1.msra.mxu0 0.0
    %889 = vmatprep.subr.mxu0 0.0
    %890 = vmatpush1.msra.mxu0 0.0
    %891 = vmatprep.subr.mxu0 0.0
    %892 = vmatpush1.msra.mxu0 0.0
    %893 = vmatprep.subr.mxu0 0.0
    %894 = vmatpush1.msra.mxu0 0.0
    %895 = vmatprep.subr.mxu0 0.0
    %896 = vmatpush1.msra.mxu0 0.0
    %897 = vmatprep.subr.mxu0 0.0
    %898 = vmatpush1.msra.mxu0 0.0
    %899 = vmatprep.subr.mxu0 0.0
    %900 = vmatpush1.msra.mxu0 0.0
    %901 = vmatprep.subr.mxu0 0.0
    %902 = vmatpush1.msra.mxu0 0.0
    %903 = vmatprep.subr.mxu0 0.0
    %904 = vmatpush1.msra.mxu0 0.0
    %905 = vmatprep.subr.mxu0 0.0
    %906 = vmatpush1.msra.mxu0 0.0
    %907 = vmatprep.subr.mxu0 0.0
    %908 = vmatpush1.msra.mxu0 0.0
    %909 = vmatprep.subr.mxu0 0.0
    %910 = vmatpush1.msra.mxu0 0.0
    %911 = vmatprep.subr.mxu0 0.0
    %912 = vmatpush1.msra.mxu0 0.0
    %913 = vmatprep.subr.mxu0 0.0
    %914 = vmatpush1.msra.mxu0 0.0
    %915 = vmatprep.mubr.f32.mxu0 0.0
    %916 = vmatmul.mubr.f32.gmra.mrb[0].mxu0 %v693
    %v917 = vpop.f32.mrb[0].mxu0
    %v918 = vadd.f32 %v771, %v917
    %v919 = vpop.f32.mrb[0].mxu0
    %v920 = vadd.f32 %v775, %v919
    %921 = vdwg.mxu0
    %v922 = vld [vmem:[#allocation7] sm:$0xff]
    %v923 = vld [vmem:[#allocation7 + $0x8] sm:$0xff]
    %v924 = vld [vmem:[#allocation7 + $0x10] sm:$0xff]
    %v925 = vld [vmem:[#allocation7 + $0x18] sm:$0xff]
    %v926 = vld [vmem:[#allocation7 + $0x20] sm:$0xff]
    %v927 = vld [vmem:[#allocation7 + $0x28] sm:$0xff]
    %v928 = vld [vmem:[#allocation7 + $0x30] sm:$0xff]
    %v929 = vld [vmem:[#allocation7 + $0x38] sm:$0xff]
    %v930 = vld [vmem:[#allocation7 + $0x40] sm:$0xff]
    %v931 = vld [vmem:[#allocation7 + $0x48] sm:$0xff]
    %v932 = vld [vmem:[#allocation7 + $0x50] sm:$0xff]
    %v933 = vld [vmem:[#allocation7 + $0x58] sm:$0xff]
    %v934 = vld [vmem:[#allocation7 + $0x60] sm:$0xff]
    %v935 = vld [vmem:[#allocation7 + $0x68] sm:$0xff]
    %v936 = vld [vmem:[#allocation7 + $0x70] sm:$0xff]
    %v937 = vld [vmem:[#allocation7 + $0x78] sm:$0xff]
    %v938 = vld [vmem:[#allocation7 + $0x80] sm:$0xff]
    %v939 = vld [vmem:[#allocation7 + $0x88] sm:$0xff]
    %v940 = vld [vmem:[#allocation7 + $0x90] sm:$0xff]
    %v941 = vld [vmem:[#allocation7 + $0x98] sm:$0xff]
    %v942 = vld [vmem:[#allocation7 + $0xa0] sm:$0xff]
    %v943 = vld [vmem:[#allocation7 + $0xa8] sm:$0xff]
    %v944 = vld [vmem:[#allocation7 + $0xb0] sm:$0xff]
    %v945 = vld [vmem:[#allocation7 + $0xb8] sm:$0xff]
    %v946 = vld [vmem:[#allocation7 + $0xc0] sm:$0xff]
    %v947 = vld [vmem:[#allocation7 + $0xc8] sm:$0xff]
    %v948 = vld [vmem:[#allocation7 + $0xd0] sm:$0xff]
    %v949 = vld [vmem:[#allocation7 + $0xd8] sm:$0xff]
    %v950 = vld [vmem:[#allocation7 + $0xe0] sm:$0xff]
    %v951 = vld [vmem:[#allocation7 + $0xe8] sm:$0xff]
    %v952 = vld [vmem:[#allocation7 + $0xf0] sm:$0xff]
    %v953 = vld [vmem:[#allocation7 + $0xf8] sm:$0xff]
    %v954 = vld [vmem:[#allocation7 + $0x100] sm:$0xff]
    %v955 = vld [vmem:[#allocation7 + $0x108] sm:$0xff]
    %v956 = vld [vmem:[#allocation7 + $0x110] sm:$0xff]
    %v957 = vld [vmem:[#allocation7 + $0x118] sm:$0xff]
    %v958 = vld [vmem:[#allocation7 + $0x120] sm:$0xff]
    %v959 = vld [vmem:[#allocation7 + $0x128] sm:$0xff]
    %v960 = vld [vmem:[#allocation7 + $0x130] sm:$0xff]
    %v961 = vld [vmem:[#allocation7 + $0x138] sm:$0xff]
    %v962 = vld [vmem:[#allocation7 + $0x140] sm:$0xff]
    %v963 = vld [vmem:[#allocation7 + $0x148] sm:$0xff]
    %v964 = vld [vmem:[#allocation7 + $0x150] sm:$0xff]
    %v965 = vld [vmem:[#allocation7 + $0x158] sm:$0xff]
    %v966 = vld [vmem:[#allocation7 + $0x160] sm:$0xff]
    %v967 = vld [vmem:[#allocation7 + $0x168] sm:$0xff]
    %v968 = vld [vmem:[#allocation7 + $0x170] sm:$0xff]
    %v969 = vld [vmem:[#allocation7 + $0x178] sm:$0xff]
    %v970 = vld [vmem:[#allocation7 + $0x180] sm:$0xff]
    %v971 = vld [vmem:[#allocation7 + $0x188] sm:$0xff]
    %v972 = vld [vmem:[#allocation7 + $0x190] sm:$0xff]
    %v973 = vld [vmem:[#allocation7 + $0x198] sm:$0xff]
    %v974 = vld [vmem:[#allocation7 + $0x1a0] sm:$0xff]
    %v975 = vld [vmem:[#allocation7 + $0x1a8] sm:$0xff]
    %v976 = vld [vmem:[#allocation7 + $0x1b0] sm:$0xff]
    %v977 = vld [vmem:[#allocation7 + $0x1b8] sm:$0xff]
    %v978 = vld [vmem:[#allocation7 + $0x1c0] sm:$0xff]
    %v979 = vld [vmem:[#allocation7 + $0x1c8] sm:$0xff]
    %v980 = vld [vmem:[#allocation7 + $0x1d0] sm:$0xff]
    %v981 = vld [vmem:[#allocation7 + $0x1d8] sm:$0xff]
    %v982 = vld [vmem:[#allocation7 + $0x1e0] sm:$0xff]
    %v983 = vld [vmem:[#allocation7 + $0x1e8] sm:$0xff]
    %v984 = vld [vmem:[#allocation7 + $0x1f0] sm:$0xff]
    %v985 = vld [vmem:[#allocation7 + $0x1f8] sm:$0xff]
    %986 = vmatprep.subr.mxu0 %v923
    %987 = vmatpush1.msra.mxu0 %v922
    %988 = vmatprep.subr.mxu0 %v927
    %989 = vmatpush1.msra.mxu0 %v926
    %990 = vmatprep.subr.mxu0 %v931
    %991 = vmatpush1.msra.mxu0 %v930
    %992 = vmatprep.subr.mxu0 %v935
    %993 = vmatpush1.msra.mxu0 %v934
    %994 = vmatprep.subr.mxu0 %v939
    %995 = vmatpush1.msra.mxu0 %v938
    %996 = vmatprep.subr.mxu0 %v943
    %997 = vmatpush1.msra.mxu0 %v942
    %998 = vmatprep.subr.mxu0 %v947
    %999 = vmatpush1.msra.mxu0 %v946
    %1000 = vmatprep.subr.mxu0 %v951
    %1001 = vmatpush1.msra.mxu0 %v950
    %1002 = vmatprep.subr.mxu0 %v955
    %1003 = vmatpush1.msra.mxu0 %v954
    %1004 = vmatprep.subr.mxu0 %v959
    %1005 = vmatpush1.msra.mxu0 %v958
    %1006 = vmatprep.subr.mxu0 %v963
    %1007 = vmatpush1.msra.mxu0 %v962
    %1008 = vmatprep.subr.mxu0 %v967
    %1009 = vmatpush1.msra.mxu0 %v966
    %1010 = vmatprep.subr.mxu0 %v971
    %1011 = vmatpush1.msra.mxu0 %v970
    %1012 = vmatprep.subr.mxu0 %v975
    %1013 = vmatpush1.msra.mxu0 %v974
    %1014 = vmatprep.subr.mxu0 %v979
    %1015 = vmatpush1.msra.mxu0 %v978
    %1016 = vmatprep.subr.mxu0 %v983
    %1017 = vmatpush1.msra.mxu0 %v982
    %1018 = vmatprep.subr.mxu0 0.0
    %1019 = vmatpush1.msra.mxu0 0.0
    %1020 = vmatprep.subr.mxu0 0.0
    %1021 = vmatpush1.msra.mxu0 0.0
    %1022 = vmatprep.subr.mxu0 0.0
    %1023 = vmatpush1.msra.mxu0 0.0
    %1024 = vmatprep.subr.mxu0 0.0
    %1025 = vmatpush1.msra.mxu0 0.0
    %1026 = vmatprep.subr.mxu0 0.0
    %1027 = vmatpush1.msra.mxu0 0.0
    %1028 = vmatprep.subr.mxu0 0.0
    %1029 = vmatpush1.msra.mxu0 0.0
    %1030 = vmatprep.subr.mxu0 0.0
    %1031 = vmatpush1.msra.mxu0 0.0
    %1032 = vmatprep.subr.mxu0 0.0
    %1033 = vmatpush1.msra.mxu0 0.0
    %1034 = vmatprep.subr.mxu0 0.0
    %1035 = vmatpush1.msra.mxu0 0.0
    %1036 = vmatprep.subr.mxu0 0.0
    %1037 = vmatpush1.msra.mxu0 0.0
    %1038 = vmatprep.subr.mxu0 0.0
    %1039 = vmatpush1.msra.mxu0 0.0
    %1040 = vmatprep.subr.mxu0 0.0
    %1041 = vmatpush1.msra.mxu0 0.0
    %1042 = vmatprep.subr.mxu0 0.0
    %1043 = vmatpush1.msra.mxu0 0.0
    %1044 = vmatprep.subr.mxu0 0.0
    %1045 = vmatpush1.msra.mxu0 0.0
    %1046 = vmatprep.subr.mxu0 0.0
    %1047 = vmatpush1.msra.mxu0 0.0
    %1048 = vmatprep.subr.mxu0 0.0
    %1049 = vmatpush1.msra.mxu0 0.0
    %1050 = vmatprep.mubr.f32.mxu0 0.0
    %1051 = vmatmul.mubr.f32.gmra.mrb[0].mxu0 0.0
    %v1052 = vpop.f32.mrb[0].mxu0
    %v1053 = vadd.f32 0.0, %v1052
    %v1054 = vpop.f32.mrb[0].mxu0
    %v1055 = vadd.f32 0.0, %v1054
    %1056 = vdwg.mxu0
    %1057 = vmatprep.subr.mxu0 %v925
    %1058 = vmatpush1.msra.mxu0 %v924
    %1059 = vmatprep.subr.mxu0 %v929
    %1060 = vmatpush1.msra.mxu0 %v928
    %1061 = vmatprep.subr.mxu0 %v933
    %1062 = vmatpush1.msra.mxu0 %v932
    %1063 = vmatprep.subr.mxu0 %v937
    %1064 = vmatpush1.msra.mxu0 %v936
    %1065 = vmatprep.subr.mxu0 %v941
    %1066 = vmatpush1.msra.mxu0 %v940
    %1067 = vmatprep.subr.mxu0 %v945
    %1068 = vmatpush1.msra.mxu0 %v944
    %1069 = vmatprep.subr.mxu0 %v949
    %1070 = vmatpush1.msra.mxu0 %v948
    %1071 = vmatprep.subr.mxu0 %v953
    %1072 = vmatpush1.msra.mxu0 %v952
    %1073 = vmatprep.subr.mxu0 %v957
    %1074 = vmatpush1.msra.mxu0 %v956
    %1075 = vmatprep.subr.mxu0 %v961
    %1076 = vmatpush1.msra.mxu0 %v960
    %1077 = vmatprep.subr.mxu0 %v965
    %1078 = vmatpush1.msra.mxu0 %v964
    %1079 = vmatprep.subr.mxu0 %v969
    %1080 = vmatpush1.msra.mxu0 %v968
    %1081 = vmatprep.subr.mxu0 %v973
    %1082 = vmatpush1.msra.mxu0 %v972
    %1083 = vmatprep.subr.mxu0 %v977
    %1084 = vmatpush1.msra.mxu0 %v976
    %1085 = vmatprep.subr.mxu0 %v981
    %1086 = vmatpush1.msra.mxu0 %v980
    %1087 = vmatprep.subr.mxu0 %v985
    %1088 = vmatpush1.msra.mxu0 %v984
    %1089 = vmatprep.subr.mxu0 0.0
    %1090 = vmatpush1.msra.mxu0 0.0
    %1091 = vmatprep.subr.mxu0 0.0
    %1092 = vmatpush1.msra.mxu0 0.0
    %1093 = vmatprep.subr.mxu0 0.0
    %1094 = vmatpush1.msra.mxu0 0.0
    %1095 = vmatprep.subr.mxu0 0.0
    %1096 = vmatpush1.msra.mxu0 0.0
    %1097 = vmatprep.subr.mxu0 0.0
    %1098 = vmatpush1.msra.mxu0 0.0
    %1099 = vmatprep.subr.mxu0 0.0
    %1100 = vmatpush1.msra.mxu0 0.0
    %1101 = vmatprep.subr.mxu0 0.0
    %1102 = vmatpush1.msra.mxu0 0.0
    %1103 = vmatprep.subr.mxu0 0.0
    %1104 = vmatpush1.msra.mxu0 0.0
    %1105 = vmatprep.subr.mxu0 0.0
    %1106 = vmatpush1.msra.mxu0 0.0
    %1107 = vmatprep.subr.mxu0 0.0
    %1108 = vmatpush1.msra.mxu0 0.0
    %1109 = vmatprep.subr.mxu0 0.0
    %1110 = vmatpush1.msra.mxu0 0.0
    %1111 = vmatprep.subr.mxu0 0.0
    %1112 = vmatpush1.msra.mxu0 0.0
    %1113 = vmatprep.subr.mxu0 0.0
    %1114 = vmatpush1.msra.mxu0 0.0
    %1115 = vmatprep.subr.mxu0 0.0
    %1116 = vmatpush1.msra.mxu0 0.0
    %1117 = vmatprep.subr.mxu0 0.0
    %1118 = vmatpush1.msra.mxu0 0.0
    %1119 = vmatprep.subr.mxu0 0.0
    %1120 = vmatpush1.msra.mxu0 0.0
    %1121 = vmatprep.mubr.f32.mxu0 0.0
    %1122 = vmatmul.mubr.f32.gmra.mrb[0].mxu0 0.0
    %v1123 = vpop.f32.mrb[0].mxu0
    %v1124 = vadd.f32 0.0, %v1123
    %v1125 = vpop.f32.mrb[0].mxu0
    %v1126 = vadd.f32 0.0, %v1125
    %1127 = vdwg.mxu0
    %v1128 = vadd.f32 %v847, %v1053
    %v1129 = vadd.f32 %v849, %v1055
    %v1130 = vadd.f32 %v918, %v1124
    %v1131 = vadd.f32 %v920, %v1126
    %v1132 = vxor.u32 %v1128, 2147483648
    %v1133 = vmul.f32 %v1132, 1.442695
    %v1134 = vpow.pop %v1133
    %v1135 = vadd.f32 %v1134, 1.0
    %v1136 = vrcp.pop %v1135
    %v1137 = vmul.f32 1.0, %v1136
    %v1138 = vxor.u32 %v1129, 2147483648
    %v1139 = vmul.f32 %v1138, 1.442695
    %v1140 = vpow.pop %v1139
    %v1141 = vadd.f32 %v1140, 1.0
    %v1142 = vrcp.pop %v1141
    %v1143 = vmul.f32 1.0, %v1142
    %v1144 = vtanh.pop %v1130
    %v1145 = vxor.u32 %v1131, 2147483648
    %v1146 = vmul.f32 %v1145, 1.442695
    %v1147 = vpow.pop %v1146
    %v1148 = vadd.f32 %v1147, 1.0
    %v1149 = vrcp.pop %v1148
    %v1150 = vmul.f32 1.0, %v1149
    %v1151 = vmul.f32 %v1143, 0.0
    %v1152 = vmul.f32 %v1137, %v1144
    %v1153 = vadd.f32 %v1151, %v1152
    %v1154 = vtanh.pop %v1153
    %v1155 = vmul.f32 %v1150, %v1154
    %1156 = vmatprep.subr.mxu0 %v923
    %1157 = vmatpush1.msra.mxu0 %v922
    %1158 = vmatprep.subr.mxu0 %v927
    %1159 = vmatpush1.msra.mxu0 %v926
    %1160 = vmatprep.subr.mxu0 %v931
    %1161 = vmatpush1.msra.mxu0 %v930
    %1162 = vmatprep.subr.mxu0 %v935
    %1163 = vmatpush1.msra.mxu0 %v934
    %1164 = vmatprep.subr.mxu0 %v939
    %1165 = vmatpush1.msra.mxu0 %v938
    %1166 = vmatprep.subr.mxu0 %v943
    %1167 = vmatpush1.msra.mxu0 %v942
    %1168 = vmatprep.subr.mxu0 %v947
    %1169 = vmatpush1.msra.mxu0 %v946
    %1170 = vmatprep.subr.mxu0 %v951
    %1171 = vmatpush1.msra.mxu0 %v950
    %1172 = vmatprep.subr.mxu0 %v955
    %1173 = vmatpush1.msra.mxu0 %v954
    %1174 = vmatprep.subr.mxu0 %v959
    %1175 = vmatpush1.msra.mxu0 %v958
    %1176 = vmatprep.subr.mxu0 %v963
    %1177 = vmatpush1.msra.mxu0 %v962
    %1178 = vmatprep.subr.mxu0 %v967
    %1179 = vmatpush1.msra.mxu0 %v966
    %1180 = vmatprep.subr.mxu0 %v971
    %1181 = vmatpush1.msra.mxu0 %v970
    %1182 = vmatprep.subr.mxu0 %v975
    %1183 = vmatpush1.msra.mxu0 %v974
    %1184 = vmatprep.subr.mxu0 %v979
    %1185 = vmatpush1.msra.mxu0 %v978
    %1186 = vmatprep.subr.mxu0 %v983
    %1187 = vmatpush1.msra.mxu0 %v982
    %1188 = vmatprep.subr.mxu0 0.0
    %1189 = vmatpush1.msra.mxu0 0.0
    %1190 = vmatprep.subr.mxu0 0.0
    %1191 = vmatpush1.msra.mxu0 0.0
    %1192 = vmatprep.subr.mxu0 0.0
    %1193 = vmatpush1.msra.mxu0 0.0
    %1194 = vmatprep.subr.mxu0 0.0
    %1195 = vmatpush1.msra.mxu0 0.0
    %1196 = vmatprep.subr.mxu0 0.0
    %1197 = vmatpush1.msra.mxu0 0.0
    %1198 = vmatprep.subr.mxu0 0.0
    %1199 = vmatpush1.msra.mxu0 0.0
    %1200 = vmatprep.subr.mxu0 0.0
    %1201 = vmatpush1.msra.mxu0 0.0
    %1202 = vmatprep.subr.mxu0 0.0
    %1203 = vmatpush1.msra.mxu0 0.0
    %1204 = vmatprep.subr.mxu0 0.0
    %1205 = vmatpush1.msra.mxu0 0.0
    %1206 = vmatprep.subr.mxu0 0.0
    %1207 = vmatpush1.msra.mxu0 0.0
    %1208 = vmatprep.subr.mxu0 0.0
    %1209 = vmatpush1.msra.mxu0 0.0
    %1210 = vmatprep.subr.mxu0 0.0
    %1211 = vmatpush1.msra.mxu0 0.0
    %1212 = vmatprep.subr.mxu0 0.0
    %1213 = vmatpush1.msra.mxu0 0.0
    %1214 = vmatprep.subr.mxu0 0.0
    %1215 = vmatpush1.msra.mxu0 0.0
    %1216 = vmatprep.subr.mxu0 0.0
    %1217 = vmatpush1.msra.mxu0 0.0
    %1218 = vmatprep.subr.mxu0 0.0
    %1219 = vmatpush1.msra.mxu0 0.0
    %1220 = vmatprep.mubr.f32.mxu0 0.0
    %1221 = vmatmul.mubr.f32.gmra.mrb[0].mxu0 %v1155
    %v1222 = vpop.f32.mrb[0].mxu0
    %v1223 = vadd.f32 0.0, %v1222
    %v1224 = vpop.f32.mrb[0].mxu0
    %v1225 = vadd.f32 0.0, %v1224
    %1226 = vdwg.mxu0
    %1227 = vmatprep.subr.mxu0 %v925
    %1228 = vmatpush1.msra.mxu0 %v924
    %1229 = vmatprep.subr.mxu0 %v929
    %1230 = vmatpush1.msra.mxu0 %v928
    %1231 = vmatprep.subr.mxu0 %v933
    %1232 = vmatpush1.msra.mxu0 %v932
    %1233 = vmatprep.subr.mxu0 %v937
    %1234 = vmatpush1.msra.mxu0 %v936
    %1235 = vmatprep.subr.mxu0 %v941
    %1236 = vmatpush1.msra.mxu0 %v940
    %1237 = vmatprep.subr.mxu0 %v945
    %1238 = vmatpush1.msra.mxu0 %v944
    %1239 = vmatprep.subr.mxu0 %v949
    %1240 = vmatpush1.msra.mxu0 %v948
    %1241 = vmatprep.subr.mxu0 %v953
    %1242 = vmatpush1.msra.mxu0 %v952
    %1243 = vmatprep.subr.mxu0 %v957
    %1244 = vmatpush1.msra.mxu0 %v956
    %1245 = vmatprep.subr.mxu0 %v961
    %1246 = vmatpush1.msra.mxu0 %v960
    %1247 = vmatprep.subr.mxu0 %v965
    %1248 = vmatpush1.msra.mxu0 %v964
    %1249 = vmatprep.subr.mxu0 %v969
    %1250 = vmatpush1.msra.mxu0 %v968
    %1251 = vmatprep.subr.mxu0 %v973
    %1252 = vmatpush1.msra.mxu0 %v972
    %1253 = vmatprep.subr.mxu0 %v977
    %1254 = vmatpush1.msra.mxu0 %v976
    %1255 = vmatprep.subr.mxu0 %v981
    %1256 = vmatpush1.msra.mxu0 %v980
    %1257 = vmatprep.subr.mxu0 %v985
    %1258 = vmatpush1.msra.mxu0 %v984
    %1259 = vmatprep.subr.mxu0 0.0
    %1260 = vmatpush1.msra.mxu0 0.0
    %1261 = vmatprep.subr.mxu0 0.0
    %1262 = vmatpush1.msra.mxu0 0.0
    %1263 = vmatprep.subr.mxu0 0.0
    %1264 = vmatpush1.msra.mxu0 0.0
    %1265 = vmatprep.subr.mxu0 0.0
    %1266 = vmatpush1.msra.mxu0 0.0
    %1267 = vmatprep.subr.mxu0 0.0
    %1268 = vmatpush1.msra.mxu0 0.0
    %1269 = vmatprep.subr.mxu0 0.0
    %1270 = vmatpush1.msra.mxu0 0.0
    %1271 = vmatprep.subr.mxu0 0.0
    %1272 = vmatpush1.msra.mxu0 0.0
    %1273 = vmatprep.subr.mxu0 0.0
    %1274 = vmatpush1.msra.mxu0 0.0
    %1275 = vmatprep.subr.mxu0 0.0
    %1276 = vmatpush1.msra.mxu0 0.0
    %1277 = vmatprep.subr.mxu0 0.0
    %1278 = vmatpush1.msra.mxu0 0.0
    %1279 = vmatprep.subr.mxu0 0.0
    %1280 = vmatpush1.msra.mxu0 0.0
    %1281 = vmatprep.subr.mxu0 0.0
    %1282 = vmatpush1.msra.mxu0 0.0
    %1283 = vmatprep.subr.mxu0 0.0
    %1284 = vmatpush1.msra.mxu0 0.0
    %1285 = vmatprep.subr.mxu0 0.0
    %1286 = vmatpush1.msra.mxu0 0.0
    %1287 = vmatprep.subr.mxu0 0.0
    %1288 = vmatpush1.msra.mxu0 0.0
    %1289 = vmatprep.subr.mxu0 0.0
    %1290 = vmatpush1.msra.mxu0 0.0
    %1291 = vmatprep.mubr.f32.mxu0 0.0
    %1292 = vmatmul.mubr.f32.gmra.mrb[0].mxu0 %v1155
    %v1293 = vpop.f32.mrb[0].mxu0
    %v1294 = vadd.f32 0.0, %v1293
    %v1295 = vpop.f32.mrb[0].mxu0
    %v1296 = vadd.f32 0.0, %v1295
    %1297 = vdwg.mxu0
    %v1302 = vrot.slane %v1223, 6
    %v1303 = vrot.slane %v1225, 6
    %v1304 = vrot.slane %v1294, 6
    %v1305 = vrot.slane %v1296, 6
    %v1310 = vadd.f32 %v847, %v1302
    %v1311 = vadd.f32 %v849, %v1303
    %v1312 = vadd.f32 %v918, %v1304
    %v1313 = vadd.f32 %v920, %v1305
    %v1314 = vxor.u32 %v1310, 2147483648
    %v1315 = vmul.f32 %v1314, 1.442695
    %v1316 = vpow.pop %v1315
    %v1317 = vadd.f32 %v1316, 1.0
    %v1318 = vrcp.pop %v1317
    %v1319 = vmul.f32 1.0, %v1318
    %v1320 = vxor.u32 %v1311, 2147483648
    %v1321 = vmul.f32 %v1320, 1.442695
    %v1322 = vpow.pop %v1321
    %v1323 = vadd.f32 %v1322, 1.0
    %v1324 = vrcp.pop %v1323
    %v1325 = vmul.f32 1.0, %v1324
    %v1326 = vtanh.pop %v1312
    %v1327 = vxor.u32 %v1313, 2147483648
    %v1328 = vmul.f32 %v1327, 1.442695
    %v1329 = vpow.pop %v1328
    %v1330 = vadd.f32 %v1329, 1.0
    %v1331 = vrcp.pop %v1330
    %v1332 = vmul.f32 1.0, %v1331
    %v1334 = vrot.slane %v1153, 6
    %v1336 = vmul.f32 %v1325, %v1334
    %v1337 = vmul.f32 %v1319, %v1326
    %v1338 = vadd.f32 %v1336, %v1337
    %v1339 = vtanh.pop %v1338
    %v1340 = vmul.f32 %v1332, %v1339
    %v1342 = vrot.slane %v1340, 2
    %1344 = vmatprep.subr.mxu0 %v923
    %1345 = vmatpush1.msra.mxu0 %v922
    %1346 = vmatprep.subr.mxu0 %v927
    %1347 = vmatpush1.msra.mxu0 %v926
    %1348 = vmatprep.subr.mxu0 %v931
    %1349 = vmatpush1.msra.mxu0 %v930
    %1350 = vmatprep.subr.mxu0 %v935
    %1351 = vmatpush1.msra.mxu0 %v934
    %1352 = vmatprep.subr.mxu0 %v939
    %1353 = vmatpush1.msra.mxu0 %v938
    %1354 = vmatprep.subr.mxu0 %v943
    %1355 = vmatpush1.msra.mxu0 %v942
    %1356 = vmatprep.subr.mxu0 %v947
    %1357 = vmatpush1.msra.mxu0 %v946
    %1358 = vmatprep.subr.mxu0 %v951
    %1359 = vmatpush1.msra.mxu0 %v950
    %1360 = vmatprep.subr.mxu0 %v955
    %1361 = vmatpush1.msra.mxu0 %v954
    %1362 = vmatprep.subr.mxu0 %v959
    %1363 = vmatpush1.msra.mxu0 %v958
    %1364 = vmatprep.subr.mxu0 %v963
    %1365 = vmatpush1.msra.mxu0 %v962
    %1366 = vmatprep.subr.mxu0 %v967
    %1367 = vmatpush1.msra.mxu0 %v966
    %1368 = vmatprep.subr.mxu0 %v971
    %1369 = vmatpush1.msra.mxu0 %v970
    %1370 = vmatprep.subr.mxu0 %v975
    %1371 = vmatpush1.msra.mxu0 %v974
    %1372 = vmatprep.subr.mxu0 %v979
    %1373 = vmatpush1.msra.mxu0 %v978
    %1374 = vmatprep.subr.mxu0 %v983
    %1375 = vmatpush1.msra.mxu0 %v982
    %1376 = vmatprep.subr.mxu0 0.0
    %1377 = vmatpush1.msra.mxu0 0.0
    %1378 = vmatprep.subr.mxu0 0.0
    %1379 = vmatpush1.msra.mxu0 0.0
    %1380 = vmatprep.subr.mxu0 0.0
    %1381 = vmatpush1.msra.mxu0 0.0
    %1382 = vmatprep.subr.mxu0 0.0
    %1383 = vmatpush1.msra.mxu0 0.0
    %1384 = vmatprep.subr.mxu0 0.0
    %1385 = vmatpush1.msra.mxu0 0.0
    %1386 = vmatprep.subr.mxu0 0.0
    %1387 = vmatpush1.msra.mxu0 0.0
    %1388 = vmatprep.subr.mxu0 0.0
    %1389 = vmatpush1.msra.mxu0 0.0
    %1390 = vmatprep.subr.mxu0 0.0
    %1391 = vmatpush1.msra.mxu0 0.0
    %1392 = vmatprep.subr.mxu0 0.0
    %1393 = vmatpush1.msra.mxu0 0.0
    %1394 = vmatprep.subr.mxu0 0.0
    %1395 = vmatpush1.msra.mxu0 0.0
    %1396 = vmatprep.subr.mxu0 0.0
    %1397 = vmatpush1.msra.mxu0 0.0
    %1398 = vmatprep.subr.mxu0 0.0
    %1399 = vmatpush1.msra.mxu0 0.0
    %1400 = vmatprep.subr.mxu0 0.0
    %1401 = vmatpush1.msra.mxu0 0.0
    %1402 = vmatprep.subr.mxu0 0.0
    %1403 = vmatpush1.msra.mxu0 0.0
    %1404 = vmatprep.subr.mxu0 0.0
    %1405 = vmatpush1.msra.mxu0 0.0
    %1406 = vmatprep.subr.mxu0 0.0
    %1407 = vmatpush1.msra.mxu0 0.0
    %1408 = vmatprep.mubr.f32.mxu0 0.0
    %1409 = vmatmul.mubr.f32.gmra.mrb[0].mxu0 %v1342
    %v1410 = vpop.f32.mrb[0].mxu0
    %v1411 = vadd.f32 0.0, %v1410
    %v1412 = vpop.f32.mrb[0].mxu0
    %v1413 = vadd.f32 0.0, %v1412
    %1414 = vdwg.mxu0
    %1415 = vmatprep.subr.mxu0 %v925
    %1416 = vmatpush1.msra.mxu0 %v924
    %1417 = vmatprep.subr.mxu0 %v929
    %1418 = vmatpush1.msra.mxu0 %v928
    %1419 = vmatprep.subr.mxu0 %v933
    %1420 = vmatpush1.msra.mxu0 %v932
    %1421 = vmatprep.subr.mxu0 %v937
    %1422 = vmatpush1.msra.mxu0 %v936
    %1423 = vmatprep.subr.mxu0 %v941
    %1424 = vmatpush1.msra.mxu0 %v940
    %1425 = vmatprep.subr.mxu0 %v945
    %1426 = vmatpush1.msra.mxu0 %v944
    %1427 = vmatprep.subr.mxu0 %v949
    %1428 = vmatpush1.msra.mxu0 %v948
    %1429 = vmatprep.subr.mxu0 %v953
    %1430 = vmatpush1.msra.mxu0 %v952
    %1431 = vmatprep.subr.mxu0 %v957
    %1432 = vmatpush1.msra.mxu0 %v956
    %1433 = vmatprep.subr.mxu0 %v961
    %1434 = vmatpush1.msra.mxu0 %v960
    %1435 = vmatprep.subr.mxu0 %v965
    %1436 = vmatpush1.msra.mxu0 %v964
    %1437 = vmatprep.subr.mxu0 %v969
    %1438 = vmatpush1.msra.mxu0 %v968
    %1439 = vmatprep.subr.mxu0 %v973
    %1440 = vmatpush1.msra.mxu0 %v972
    %1441 = vmatprep.subr.mxu0 %v977
    %1442 = vmatpush1.msra.mxu0 %v976
    %1443 = vmatprep.subr.mxu0 %v981
    %1444 = vmatpush1.msra.mxu0 %v980
    %1445 = vmatprep.subr.mxu0 %v985
    %1446 = vmatpush1.msra.mxu0 %v984
    %1447 = vmatprep.subr.mxu0 0.0
    %1448 = vmatpush1.msra.mxu0 0.0
    %1449 = vmatprep.subr.mxu0 0.0
    %1450 = vmatpush1.msra.mxu0 0.0
    %1451 = vmatprep.subr.mxu0 0.0
    %1452 = vmatpush1.msra.mxu0 0.0
    %1453 = vmatprep.subr.mxu0 0.0
    %1454 = vmatpush1.msra.mxu0 0.0
    %1455 = vmatprep.subr.mxu0 0.0
    %1456 = vmatpush1.msra.mxu0 0.0
    %1457 = vmatprep.subr.mxu0 0.0
    %1458 = vmatpush1.msra.mxu0 0.0
    %1459 = vmatprep.subr.mxu0 0.0
    %1460 = vmatpush1.msra.mxu0 0.0
    %1461 = vmatprep.subr.mxu0 0.0
    %1462 = vmatpush1.msra.mxu0 0.0
    %1463 = vmatprep.subr.mxu0 0.0
    %1464 = vmatpush1.msra.mxu0 0.0
    %1465 = vmatprep.subr.mxu0 0.0
    %1466 = vmatpush1.msra.mxu0 0.0
    %1467 = vmatprep.subr.mxu0 0.0
    %1468 = vmatpush1.msra.mxu0 0.0
    %1469 = vmatprep.subr.mxu0 0.0
    %1470 = vmatpush1.msra.mxu0 0.0
    %1471 = vmatprep.subr.mxu0 0.0
    %1472 = vmatpush1.msra.mxu0 0.0
    %1473 = vmatprep.subr.mxu0 0.0
    %1474 = vmatpush1.msra.mxu0 0.0
    %1475 = vmatprep.subr.mxu0 0.0
    %1476 = vmatpush1.msra.mxu0 0.0
    %1477 = vmatprep.subr.mxu0 0.0
    %1478 = vmatpush1.msra.mxu0 0.0
    %1479 = vmatprep.mubr.f32.mxu0 0.0
    %1480 = vmatmul.mubr.f32.gmra.mrb[0].mxu0 %v1342
    %v1481 = vpop.f32.mrb[0].mxu0
    %v1482 = vadd.f32 0.0, %v1481
    %v1483 = vpop.f32.mrb[0].mxu0
    %v1484 = vadd.f32 0.0, %v1483
    %1485 = vdwg.mxu0
    %v1490 = vrot.slane %v1411, 4
    %v1491 = vrot.slane %v1413, 4
    %v1492 = vrot.slane %v1482, 4
    %v1493 = vrot.slane %v1484, 4
    %v1498 = vadd.f32 %v847, %v1490
    %v1499 = vadd.f32 %v849, %v1491
    %v1500 = vadd.f32 %v918, %v1492
    %v1501 = vadd.f32 %v920, %v1493
    %v1502 = vxor.u32 %v1498, 2147483648
    %v1503 = vmul.f32 %v1502, 1.442695
    %v1504 = vpow.pop %v1503
    %v1505 = vadd.f32 %v1504, 1.0
    %v1506 = vrcp.pop %v1505
    %v1507 = vmul.f32 1.0, %v1506
    %v1508 = vxor.u32 %v1499, 2147483648
    %v1509 = vmul.f32 %v1508, 1.442695
    %v1510 = vpow.pop %v1509
    %v1511 = vadd.f32 %v1510, 1.0
    %v1512 = vrcp.pop %v1511
    %v1513 = vmul.f32 1.0, %v1512
    %v1514 = vtanh.pop %v1500
    %v1515 = vxor.u32 %v1501, 2147483648
    %v1516 = vmul.f32 %v1515, 1.442695
    %v1517 = vpow.pop %v1516
    %v1518 = vadd.f32 %v1517, 1.0
    %v1519 = vrcp.pop %v1518
    %v1520 = vmul.f32 1.0, %v1519
    %v1522 = vrot.slane %v1338, 6
    %v1524 = vmul.f32 %v1513, %v1522
    %v1525 = vmul.f32 %v1507, %v1514
    %v1526 = vadd.f32 %v1524, %v1525
    %v1527 = vtanh.pop %v1526
    %v1528 = vmul.f32 %v1520, %v1527
    %v1530 = vrot.slane %v1528, 4
    %1532 = vmatprep.subr.mxu0 %v923
    %1533 = vmatpush1.msra.mxu0 %v922
    %1534 = vmatprep.subr.mxu0 %v927
    %1535 = vmatpush1.msra.mxu0 %v926
    %1536 = vmatprep.subr.mxu0 %v931
    %1537 = vmatpush1.msra.mxu0 %v930
    %1538 = vmatprep.subr.mxu0 %v935
    %1539 = vmatpush1.msra.mxu0 %v934
    %1540 = vmatprep.subr.mxu0 %v939
    %1541 = vmatpush1.msra.mxu0 %v938
    %1542 = vmatprep.subr.mxu0 %v943
    %1543 = vmatpush1.msra.mxu0 %v942
    %1544 = vmatprep.subr.mxu0 %v947
    %1545 = vmatpush1.msra.mxu0 %v946
    %1546 = vmatprep.subr.mxu0 %v951
    %1547 = vmatpush1.msra.mxu0 %v950
    %1548 = vmatprep.subr.mxu0 %v955
    %1549 = vmatpush1.msra.mxu0 %v954
    %1550 = vmatprep.subr.mxu0 %v959
    %1551 = vmatpush1.msra.mxu0 %v958
    %1552 = vmatprep.subr.mxu0 %v963
    %1553 = vmatpush1.msra.mxu0 %v962
    %1554 = vmatprep.subr.mxu0 %v967
    %1555 = vmatpush1.msra.mxu0 %v966
    %1556 = vmatprep.subr.mxu0 %v971
    %1557 = vmatpush1.msra.mxu0 %v970
    %1558 = vmatprep.subr.mxu0 %v975
    %1559 = vmatpush1.msra.mxu0 %v974
    %1560 = vmatprep.subr.mxu0 %v979
    %1561 = vmatpush1.msra.mxu0 %v978
    %1562 = vmatprep.subr.mxu0 %v983
    %1563 = vmatpush1.msra.mxu0 %v982
    %1564 = vmatprep.subr.mxu0 0.0
    %1565 = vmatpush1.msra.mxu0 0.0
    %1566 = vmatprep.subr.mxu0 0.0
    %1567 = vmatpush1.msra.mxu0 0.0
    %1568 = vmatprep.subr.mxu0 0.0
    %1569 = vmatpush1.msra.mxu0 0.0
    %1570 = vmatprep.subr.mxu0 0.0
    %1571 = vmatpush1.msra.mxu0 0.0
    %1572 = vmatprep.subr.mxu0 0.0
    %1573 = vmatpush1.msra.mxu0 0.0
    %1574 = vmatprep.subr.mxu0 0.0
    %1575 = vmatpush1.msra.mxu0 0.0
    %1576 = vmatprep.subr.mxu0 0.0
    %1577 = vmatpush1.msra.mxu0 0.0
    %1578 = vmatprep.subr.mxu0 0.0
    %1579 = vmatpush1.msra.mxu0 0.0
    %1580 = vmatprep.subr.mxu0 0.0
    %1581 = vmatpush1.msra.mxu0 0.0
    %1582 = vmatprep.subr.mxu0 0.0
    %1583 = vmatpush1.msra.mxu0 0.0
    %1584 = vmatprep.subr.mxu0 0.0
    %1585 = vmatpush1.msra.mxu0 0.0
    %1586 = vmatprep.subr.mxu0 0.0
    %1587 = vmatpush1.msra.mxu0 0.0
    %1588 = vmatprep.subr.mxu0 0.0
    %1589 = vmatpush1.msra.mxu0 0.0
    %1590 = vmatprep.subr.mxu0 0.0
    %1591 = vmatpush1.msra.mxu0 0.0
    %1592 = vmatprep.subr.mxu0 0.0
    %1593 = vmatpush1.msra.mxu0 0.0
    %1594 = vmatprep.subr.mxu0 0.0
    %1595 = vmatpush1.msra.mxu0 0.0
    %1596 = vmatprep.mubr.f32.mxu0 0.0
    %1597 = vmatmul.mubr.f32.gmra.mrb[0].mxu0 %v1530
    %v1598 = vpop.f32.mrb[0].mxu0
    %v1599 = vadd.f32 0.0, %v1598
    %v1600 = vpop.f32.mrb[0].mxu0
    %v1601 = vadd.f32 0.0, %v1600
    %1602 = vdwg.mxu0
    %1603 = vmatprep.subr.mxu0 %v925
    %1604 = vmatpush1.msra.mxu0 %v924
    %1605 = vmatprep.subr.mxu0 %v929
    %1606 = vmatpush1.msra.mxu0 %v928
    %1607 = vmatprep.subr.mxu0 %v933
    %1608 = vmatpush1.msra.mxu0 %v932
    %1609 = vmatprep.subr.mxu0 %v937
    %1610 = vmatpush1.msra.mxu0 %v936
    %1611 = vmatprep.subr.mxu0 %v941
    %1612 = vmatpush1.msra.mxu0 %v940
    %1613 = vmatprep.subr.mxu0 %v945
    %1614 = vmatpush1.msra.mxu0 %v944
    %1615 = vmatprep.subr.mxu0 %v949
    %1616 = vmatpush1.msra.mxu0 %v948
    %1617 = vmatprep.subr.mxu0 %v953
    %1618 = vmatpush1.msra.mxu0 %v952
    %1619 = vmatprep.subr.mxu0 %v957
    %1620 = vmatpush1.msra.mxu0 %v956
    %1621 = vmatprep.subr.mxu0 %v961
    %1622 = vmatpush1.msra.mxu0 %v960
    %1623 = vmatprep.subr.mxu0 %v965
    %1624 = vmatpush1.msra.mxu0 %v964
    %1625 = vmatprep.subr.mxu0 %v969
    %1626 = vmatpush1.msra.mxu0 %v968
    %1627 = vmatprep.subr.mxu0 %v973
    %1628 = vmatpush1.msra.mxu0 %v972
    %1629 = vmatprep.subr.mxu0 %v977
    %1630 = vmatpush1.msra.mxu0 %v976
    %1631 = vmatprep.subr.mxu0 %v981
    %1632 = vmatpush1.msra.mxu0 %v980
    %1633 = vmatprep.subr.mxu0 %v985
    %1634 = vmatpush1.msra.mxu0 %v984
    %1635 = vmatprep.subr.mxu0 0.0
    %1636 = vmatpush1.msra.mxu0 0.0
    %1637 = vmatprep.subr.mxu0 0.0
    %1638 = vmatpush1.msra.mxu0 0.0
    %1639 = vmatprep.subr.mxu0 0.0
    %1640 = vmatpush1.msra.mxu0 0.0
    %1641 = vmatprep.subr.mxu0 0.0
    %1642 = vmatpush1.msra.mxu0 0.0
    %1643 = vmatprep.subr.mxu0 0.0
    %1644 = vmatpush1.msra.mxu0 0.0
    %1645 = vmatprep.subr.mxu0 0.0
    %1646 = vmatpush1.msra.mxu0 0.0
    %1647 = vmatprep.subr.mxu0 0.0
    %1648 = vmatpush1.msra.mxu0 0.0
    %1649 = vmatprep.subr.mxu0 0.0
    %1650 = vmatpush1.msra.mxu0 0.0
    %1651 = vmatprep.subr.mxu0 0.0
    %1652 = vmatpush1.msra.mxu0 0.0
    %1653 = vmatprep.subr.mxu0 0.0
    %1654 = vmatpush1.msra.mxu0 0.0
    %1655 = vmatprep.subr.mxu0 0.0
    %1656 = vmatpush1.msra.mxu0 0.0
    %1657 = vmatprep.subr.mxu0 0.0
    %1658 = vmatpush1.msra.mxu0 0.0
    %1659 = vmatprep.subr.mxu0 0.0
    %1660 = vmatpush1.msra.mxu0 0.0
    %1661 = vmatprep.subr.mxu0 0.0
    %1662 = vmatpush1.msra.mxu0 0.0
    %1663 = vmatprep.subr.mxu0 0.0
    %1664 = vmatpush1.msra.mxu0 0.0
    %1665 = vmatprep.subr.mxu0 0.0
    %1666 = vmatpush1.msra.mxu0 0.0
    %1667 = vmatprep.mubr.f32.mxu0 0.0
    %1668 = vmatmul.mubr.f32.gmra.mrb[0].mxu0 %v1530
    %v1669 = vpop.f32.mrb[0].mxu0
    %v1670 = vadd.f32 0.0, %v1669
    %v1671 = vpop.f32.mrb[0].mxu0
    %v1672 = vadd.f32 0.0, %v1671
    %1673 = vdwg.mxu0
    %v1678 = vrot.slane %v1599, 2
    %v1679 = vrot.slane %v1601, 2
    %v1680 = vrot.slane %v1670, 2
    %v1681 = vrot.slane %v1672, 2
    %v1686 = vadd.f32 %v847, %v1678
    %v1687 = vadd.f32 %v849, %v1679
    %v1688 = vadd.f32 %v918, %v1680
    %v1689 = vadd.f32 %v920, %v1681
    %v1690 = vxor.u32 %v1686, 2147483648
    %v1691 = vmul.f32 %v1690, 1.442695
    %v1692 = vpow.pop %v1691
    %v1693 = vadd.f32 %v1692, 1.0
    %v1694 = vrcp.pop %v1693
    %v1695 = vmul.f32 1.0, %v1694
    %v1696 = vxor.u32 %v1687, 2147483648
    %v1697 = vmul.f32 %v1696, 1.442695
    %v1698 = vpow.pop %v1697
    %v1699 = vadd.f32 %v1698, 1.0
    %v1700 = vrcp.pop %v1699
    %v1701 = vmul.f32 1.0, %v1700
    %v1702 = vtanh.pop %v1688
    %v1703 = vxor.u32 %v1689, 2147483648
    %v1704 = vmul.f32 %v1703, 1.442695
    %v1705 = vpow.pop %v1704
    %v1706 = vadd.f32 %v1705, 1.0
    %v1707 = vrcp.pop %v1706
    %v1708 = vmul.f32 1.0, %v1707
    %v1710 = vrot.slane %v1526, 6
    %v1712 = vmul.f32 %v1701, %v1710
    %v1713 = vmul.f32 %v1695, %v1702
    %v1714 = vadd.f32 %v1712, %v1713
    %v1715 = vtanh.pop %v1714
    %v1716 = vmul.f32 %v1708, %v1715
    %v1717 = vld [vmem:[%s7] sm:$0xff]
    %v1718 = vld [vmem:[%s7 + $0x8] sm:$0xff]
    %v1719 = vld [vmem:[%s7 + $0x10] sm:$0xff]
    %v1720 = vld [vmem:[%s7 + $0x18] sm:$0xff]
    %v1721 = vld [vmem:[%s7 + $0x20] sm:$0xff]
    %v1722 = vld [vmem:[%s7 + $0x28] sm:$0xff]
    %v1723 = vld [vmem:[%s7 + $0x30] sm:$0xff]
    %v1724 = vld [vmem:[%s7 + $0x38] sm:$0xff]
    %v1725 = vld [vmem:[%s7 + $0x40] sm:$0xff]
    %v1726 = vld [vmem:[%s7 + $0x48] sm:$0xff]
    %v1727 = vld [vmem:[%s7 + $0x50] sm:$0xff]
    %v1728 = vld [vmem:[%s7 + $0x58] sm:$0xff]
    %v1729 = vld [vmem:[%s7 + $0x60] sm:$0xff]
    %v1730 = vld [vmem:[%s7 + $0x68] sm:$0xff]
    %v1731 = vld [vmem:[%s7 + $0x70] sm:$0xff]
    %v1732 = vld [vmem:[%s7 + $0x78] sm:$0xff]
    %v1733 = vld [vmem:[%s8] sm:$0x1]
    %v1735 = vlaneseq
    %v1736 = vshrl.u32 %v1735, 7
    %v1737 = vsub.s32 0, %v1736
    %v1738 = vrot.slane %v1733, %v1737
    %v1741 = vrot.slane %v1716, 6
    %1743 = vmatprep.subr.mxu0 0.0
    %1744 = vmatpush1.msra.mxu0 %v1717
    %1745 = vmatprep.subr.mxu0 0.0
    %1746 = vmatpush1.msra.mxu0 %v1718
    %1747 = vmatprep.subr.mxu0 0.0
    %1748 = vmatpush1.msra.mxu0 %v1719
    %1749 = vmatprep.subr.mxu0 0.0
    %1750 = vmatpush1.msra.mxu0 %v1720
    %1751 = vmatprep.subr.mxu0 0.0
    %1752 = vmatpush1.msra.mxu0 %v1721
    %1753 = vmatprep.subr.mxu0 0.0
    %1754 = vmatpush1.msra.mxu0 %v1722
    %1755 = vmatprep.subr.mxu0 0.0
    %1756 = vmatpush1.msra.mxu0 %v1723
    %1757 = vmatprep.subr.mxu0 0.0
    %1758 = vmatpush1.msra.mxu0 %v1724
    %1759 = vmatprep.subr.mxu0 0.0
    %1760 = vmatpush1.msra.mxu0 %v1725
    %1761 = vmatprep.subr.mxu0 0.0
    %1762 = vmatpush1.msra.mxu0 %v1726
    %1763 = vmatprep.subr.mxu0 0.0
    %1764 = vmatpush1.msra.mxu0 %v1727
    %1765 = vmatprep.subr.mxu0 0.0
    %1766 = vmatpush1.msra.mxu0 %v1728
    %1767 = vmatprep.subr.mxu0 0.0
    %1768 = vmatpush1.msra.mxu0 %v1729
    %1769 = vmatprep.subr.mxu0 0.0
    %1770 = vmatpush1.msra.mxu0 %v1730
    %1771 = vmatprep.subr.mxu0 0.0
    %1772 = vmatpush1.msra.mxu0 %v1731
    %1773 = vmatprep.subr.mxu0 0.0
    %1774 = vmatpush1.msra.mxu0 %v1732
    %1775 = vmatprep.subr.mxu0 0.0
    %1776 = vmatpush1.msra.mxu0 0.0
    %1777 = vmatprep.subr.mxu0 0.0
    %1778 = vmatpush1.msra.mxu0 0.0
    %1779 = vmatprep.subr.mxu0 0.0
    %1780 = vmatpush1.msra.mxu0 0.0
    %1781 = vmatprep.subr.mxu0 0.0
    %1782 = vmatpush1.msra.mxu0 0.0
    %1783 = vmatprep.subr.mxu0 0.0
    %1784 = vmatpush1.msra.mxu0 0.0
    %1785 = vmatprep.subr.mxu0 0.0
    %1786 = vmatpush1.msra.mxu0 0.0
    %1787 = vmatprep.subr.mxu0 0.0
    %1788 = vmatpush1.msra.mxu0 0.0
    %1789 = vmatprep.subr.mxu0 0.0
    %1790 = vmatpush1.msra.mxu0 0.0
    %1791 = vmatprep.subr.mxu0 0.0
    %1792 = vmatpush1.msra.mxu0 0.0
    %1793 = vmatprep.subr.mxu0 0.0
    %1794 = vmatpush1.msra.mxu0 0.0
    %1795 = vmatprep.subr.mxu0 0.0
    %1796 = vmatpush1.msra.mxu0 0.0
    %1797 = vmatprep.subr.mxu0 0.0
    %1798 = vmatpush1.msra.mxu0 0.0
    %1799 = vmatprep.subr.mxu0 0.0
    %1800 = vmatpush1.msra.mxu0 0.0
    %1801 = vmatprep.subr.mxu0 0.0
    %1802 = vmatpush1.msra.mxu0 0.0
    %1803 = vmatprep.subr.mxu0 0.0
    %1804 = vmatpush1.msra.mxu0 0.0
    %1805 = vmatprep.subr.mxu0 0.0
    %1806 = vmatpush1.msra.mxu0 0.0
    %1807 = vmatprep.mubr.f32.mxu0 0.0
    %1808 = vmatmul.mubr.f32.gmra.mrb[0].mxu0 %v1741
    %v1809 = vpop.f32.mrb[0].mxu0
    %v1810 = vadd.f32 %v1738, %v1809
    %v1811 = vpop.f32.mrb[0].mxu0
    %1812 = vdwg.mxu0
    %vm1813 = vcmask 9216
    %1814 = vst.msk [vmem:[#allocation8] sm:$0x3] %vm1813, %v1810
    // Predicated region
    $region50: #{conv_lstm_forward.1} parent=1 // pred_check
      _
    $region51: #{conv_lstm_forward.1} parent=1 // pred_check_branch
      %1816 = sbr.rel (0) target = $region53
    $region52: #{conv_lstm_forward.1} parent=1 // pred_region
      %s1818 = ssub.s32 32, 32
      %1819 = vsyncadd [#allocation4], %s1818
      %s1821 = sshll.u32 [#allocation8], 4
      %s1822 = int_to_ptr.vmem [resolvable:$true] %s1821
      %1824 = dma.vmem_to_hbm [thread:$0]  %s1822, 32, %s9, [#allocation4]
    $region53: #{conv_lstm_forward.1} parent=1 // pred_fallthru
      _
    // Predicated region
    $region54: #{conv_lstm_forward.1} parent=1 // pred_check
      _
    $region55: #{conv_lstm_forward.1} parent=1 // pred_check_branch
      %1826 = sbr.rel (0) target = $region57
    $region56: #{conv_lstm_forward.1} parent=1 // pred_region
      %1827 = dma.done [#allocation4], 32
    $region57: #{conv_lstm_forward.1} parent=1 // pred_fallthru
      _
    %1828 = vsyncpa [#allocation3], 1
    %1829 = vsyncpa [#allocation6], 1
    %1830 = vsyncpa [#allocation4], 1

</llo_original>
